<compile_context>
chip_gen: v5e
topology: v5e:2x2
jax: 0.10.0
libtpu: 0.0.40
codegen_flags: <defaults>
</compile_context>

<pallas_src>
import functools

import numpy as np

import jax
import jax.numpy as jnp
from jax.experimental import pallas as pl
from jax.experimental.pallas import tpu as pltpu

NUM_CLASSES = 2   # ENet segmentation classes (synthetic stand-in)
HIDDEN = 8        # hidden channels for both sub-nets


# ----------------------------------------------------------------------------
# Host-side helpers (numpy, cached; converted to device constants under jit)
# ----------------------------------------------------------------------------
@functools.lru_cache(maxsize=None)
def _tap_masks_np(h, w):
    """(9, H*W) 0/1 masks: mask[t, p] == 1 iff tap t = (kh*3 + kw) reads an
    in-bounds source pixel for output position p (zero padding folded in)."""
    hw = h * w
    p = np.arange(hw)
    hi, wi = p // w, p % w
    m = np.zeros((9, hw), np.float32)
    for t in range(9):
        dh, dw = t // 3 - 1, t % 3 - 1
        ok = (hi + dh >= 0) & (hi + dh < h) & (wi + dw >= 0) & (wi + dw < w)
        m[t, ok] = 1.0
    return m


def _flat_taps(w):
    """(Cout, Cin, 3, 3) OIHW weights -> (Cout, 9*Cin), tap-major k = t*Cin+ci."""
    cout, cin, kh, kw = w.shape
    return jnp.transpose(w, (0, 2, 3, 1)).reshape(cout, kh * kw * cin)


def _full_spec(arr):
    return pl.BlockSpec(arr.shape, lambda i: (0,) * arr.ndim)


def _pick_bt(b):
    """Batch-block size: largest divisor of b (capped at 16) that still leaves
    >= 2 grid steps, so v7x's two TensorCores both get work."""
    if b < 2:
        return max(b, 1)
    cands = [d for d in range(1, min(b, 16) + 1) if b % d == 0 and b // d >= 2]
    return max(cands) if cands else 1


# ----------------------------------------------------------------------------
# Fused kernel.  Activation layout: (channels, N) with N = Bt*H*W on lanes.
# ----------------------------------------------------------------------------
def _scorrnet_kernel(x_ref, mask_ref,
                     ew1_ref, eb1_ref, ew2_ref, eb2_ref, ew3_ref, eb3_ref,
                     cw1_ref, cb1_ref, cw2_ref, cb2_ref, cw3_ref, cb3_ref,
                     seg_ref, dis_ref, *, img_w):
    n = x_ref.shape[1]                                       # Bt * H * W

    def conv3x3(act, w_ref, b_ref):
        # act: (Cin, N); w_ref: (Cout, 9*Cin) tap-major; b_ref: (Cout, 1).
        # col[t*Cin+ci, p] = act[ci, p + dh*W + dw] (0 outside the image):
        #   jnp.roll semantics give out[i] = x[(i - shift) mod N], so the
        #   shift for source offset s = dh*W + dw is (-s) mod N; edge/wrap
        #   lanes are zeroed by the precomputed masks.
        cols = []
        for t in range(9):
            dh, dw = t // 3 - 1, t % 3 - 1
            if dh == 0 and dw == 0:
                cols.append(act)                             # center tap
                continue
            shift = (-(dh * img_w + dw)) % n
            rolled = pltpu.roll(act, shift=shift, axis=1)    # XLU lane rotate
            cols.append(rolled * mask_ref[t:t + 1, :])
        col = jnp.concatenate(cols, axis=0)                  # (9*Cin, N)
        y = jnp.dot(w_ref[...], col, preferred_element_type=jnp.float32)
        return jnp.maximum(y + b_ref[...], 0.0)

    x = x_ref[...]                                           # (C, N)

    # ---- seg = ENet(x[:, 0:1]) ----
    h = conv3x3(x[0:1, :], ew1_ref, eb1_ref)
    h = conv3x3(h, ew2_ref, eb2_ref)
    logits = (jnp.dot(ew3_ref[...], h, preferred_element_type=jnp.float32)
              + eb3_ref[...])                                # (NC, N)
    seg_ref[...] = logits

    # ---- mask = argmax(seg, dim=1) (first max wins, like torch.argmax) ----
    best_val = logits[0:1, :]
    best_idx = jnp.zeros((1, n), jnp.float32)
    for c in range(1, logits.shape[0]):
        v = logits[c:c + 1, :]
        take = v > best_val
        best_val = jnp.where(take, v, best_val)
        best_idx = jnp.where(take, jnp.float32(c), best_idx)

    # ---- dis = CorrNet(cat([x, mask], dim=1)), concat assembled in vregs ----
    xc = jnp.concatenate([x, best_idx], axis=0)              # (C+1, N)
    g = conv3x3(xc, cw1_ref, cb1_ref)
    g = conv3x3(g, cw2_ref, cb2_ref)
    dis = (jnp.dot(cw3_ref[...], g, preferred_element_type=jnp.float32)
           + cb3_ref[...])                                   # (1, N)
    dis_ref[...] = dis


# ----------------------------------------------------------------------------
# Public forward (single pallas_call)
# ----------------------------------------------------------------------------
@jax.jit
def scorrnet_forward(params, x_nchw):
    B, C, H, W = x_nchw.shape
    HW = H * W
    bt = _pick_bt(B)
    nblk = B // bt
    n = bt * HW

    # Lane-dense layout: channels on sublanes, (batch, pixels) on lanes.
    x2 = jnp.transpose(x_nchw.astype(jnp.float32), (1, 0, 2, 3)).reshape(C, B * HW)
    tapmask = jnp.asarray(np.tile(_tap_masks_np(H, W), (1, bt)))   # (9, n)

    ew1 = _flat_taps(params["e_w1"]); eb1 = params["e_b1"].reshape(HIDDEN, 1)
    ew2 = _flat_taps(params["e_w2"]); eb2 = params["e_b2"].reshape(HIDDEN, 1)
    ew3 = params["e_w3"];             eb3 = params["e_b3"].reshape(NUM_CLASSES, 1)
    cw1 = _flat_taps(params["c_w1"]); cb1 = params["c_b1"].reshape(HIDDEN, 1)
    cw2 = _flat_taps(params["c_w2"]); cb2 = params["c_b2"].reshape(HIDDEN, 1)
    cw3 = params["c_w3"];             cb3 = params["c_b3"].reshape(1, 1)

    seg2, dis2 = pl.pallas_call(
        functools.partial(_scorrnet_kernel, img_w=W),
        out_shape=(jax.ShapeDtypeStruct((NUM_CLASSES, B * HW), jnp.float32),
                   jax.ShapeDtypeStruct((1, B * HW), jnp.float32)),
        grid=(nblk,),
        in_specs=[
            pl.BlockSpec((C, n), lambda i: (0, i)),          # x (Bt elems/step)
            _full_spec(tapmask),                             # edge masks
            _full_spec(ew1), _full_spec(eb1),
            _full_spec(ew2), _full_spec(eb2),
            _full_spec(ew3), _full_spec(eb3),
            _full_spec(cw1), _full_spec(cb1),
            _full_spec(cw2), _full_spec(cb2),
            _full_spec(cw3), _full_spec(cb3),
        ],
        out_specs=(pl.BlockSpec((NUM_CLASSES, n), lambda i: (0, i)),
                   pl.BlockSpec((1, n), lambda i: (0, i))),
        compiler_params=pltpu.CompilerParams(
            dimension_semantics=("parallel",)),
    )(x2, tapmask, ew1, eb1, ew2, eb2, ew3, eb3, cw1, cb1, cw2, cb2, cw3, cb3)

    seg = seg2.reshape(NUM_CLASSES, B, H, W).transpose(1, 0, 2, 3)
    dis = dis2.reshape(1, B, H, W).transpose(1, 0, 2, 3)
    return seg, dis


# ----------------------------------------------------------------------------
# Parameters (deterministic, in-script) and a pure-JAX reference for checking
# ----------------------------------------------------------------------------
def init_params(key, in_channels):
    def conv_w(k, cout, cin, kh, kw):
        fan_in = cin * kh * kw
        return (jax.random.normal(k, (cout, cin, kh, kw), jnp.float32)
                / np.sqrt(float(fan_in)))

    ks = jax.random.split(key, 12)
    cinc = in_channels + 1
    return {
        "e_w1": conv_w(ks[0], HIDDEN, 1, 3, 3),
        "e_b1": 0.1 * jax.random.normal(ks[1], (HIDDEN,), jnp.float32),
        "e_w2": conv_w(ks[2], HIDDEN, HIDDEN, 3, 3),
        "e_b2": 0.1 * jax.random.normal(ks[3], (HIDDEN,), jnp.float32),
        "e_w3": conv_w(ks[4], NUM_CLASSES, HIDDEN, 1, 1)[:, :, 0, 0],
        "e_b3": 0.1 * jax.random.normal(ks[5], (NUM_CLASSES,), jnp.float32),
        "c_w1": conv_w(ks[6], HIDDEN, cinc, 3, 3),
        "c_b1": 0.1 * jax.random.normal(ks[7], (HIDDEN,), jnp.float32),
        "c_w2": conv_w(ks[8], HIDDEN, HIDDEN, 3, 3),
        "c_b2": 0.1 * jax.random.normal(ks[9], (HIDDEN,), jnp.float32),
        "c_w3": conv_w(ks[10], 1, HIDDEN, 1, 1)[:, :, 0, 0],
        "c_b3": 0.1 * jax.random.normal(ks[11], (1,), jnp.float32),
    }


def scorrnet_reference(params, x_nchw):
    hp = jax.lax.Precision.HIGHEST

    def conv3x3(x, w, b):
        y = jax.lax.conv_general_dilated(
            x, w, window_strides=(1, 1), padding=((1, 1), (1, 1)),
            dimension_numbers=("NCHW", "OIHW", "NCHW"), precision=hp)
        return jnp.maximum(y + b.reshape(1, -1, 1, 1), 0.0)

    def conv1x1(x, w, b):
        return (jnp.einsum("oc,bchw->bohw", w, x, precision=hp)
                + b.reshape(1, -1, 1, 1))

    x = x_nchw.astype(jnp.float32)
    h = conv3x3(x[:, 0:1], params["e_w1"], params["e_b1"])
    h = conv3x3(h, params["e_w2"], params["e_b2"])
    seg = conv1x1(h, params["e_w3"], params["e_b3"])
    mask = jnp.argmax(seg, axis=1).astype(jnp.float32)[:, None]
    xc = jnp.concatenate([x, mask], axis=1)
    g = conv3x3(xc, params["c_w1"], params["c_b1"])
    g = conv3x3(g, params["c_w2"], params["c_b2"])
    dis = conv1x1(g, params["c_w3"], params["c_b3"])
    return seg, dis


if __name__ == "__main__":
    B, C, H, W = 2, 4, 16, 16
    key = jax.random.PRNGKey(0)
    k_x, k_p = jax.random.split(key)
    x = jax.random.normal(k_x, (B, C, H, W), jnp.float32)
    params = init_params(k_p, in_channels=C)

    seg, dis = scorrnet_forward(params, x)
    seg = jax.block_until_ready(seg)
    dis = jax.block_until_ready(dis)

    assert seg.shape == (B, NUM_CLASSES, H, W), seg.shape
    assert dis.shape == (B, 1, H, W), dis.shape
    assert bool(jnp.all(jnp.isfinite(seg))) and bool(jnp.all(jnp.isfinite(dis)))

    # Validate the fused Pallas kernel against a pure-JAX reference.
    seg_ref, dis_ref = scorrnet_reference(params, x)
    assert jnp.allclose(seg, seg_ref, rtol=1e-3, atol=1e-3), \
        float(jnp.max(jnp.abs(seg - seg_ref)))
    assert jnp.allclose(dis, dis_ref, rtol=1e-3, atol=1e-3), \
        float(jnp.max(jnp.abs(dis - dis_ref)))

    print("KERNEL_OK")
</pallas_src>

<mosaic_0001>
module attributes {stable_mosaic.version = 11 : i64} {
  func.func @_scorrnet_kernel(%arg0: i32, %arg1: memref<4x256xf32, #tpu.memory_space<vmem>>, %arg2: memref<9x256xf32, #tpu.memory_space<vmem>>, %arg3: memref<8x9xf32, #tpu.memory_space<vmem>>, %arg4: memref<8x1xf32, #tpu.memory_space<vmem>>, %arg5: memref<8x72xf32, #tpu.memory_space<vmem>>, %arg6: memref<8x1xf32, #tpu.memory_space<vmem>>, %arg7: memref<2x8xf32, #tpu.memory_space<vmem>>, %arg8: memref<2x1xf32, #tpu.memory_space<vmem>>, %arg9: memref<8x45xf32, #tpu.memory_space<vmem>>, %arg10: memref<8x1xf32, #tpu.memory_space<vmem>>, %arg11: memref<8x72xf32, #tpu.memory_space<vmem>>, %arg12: memref<8x1xf32, #tpu.memory_space<vmem>>, %arg13: memref<1x8xf32, #tpu.memory_space<vmem>>, %arg14: memref<1x1xf32, #tpu.memory_space<vmem>>, %arg15: memref<2x256xf32, #tpu.memory_space<vmem>>, %arg16: memref<1x256xf32, #tpu.memory_space<vmem>>) attributes {dimension_semantics = [#tpu.dimension_semantics<parallel>], iteration_bounds = array<i64: 2>, scalar_prefetch = 0 : i64, scratch_operands = 0 : i64, tpu.core_type = #tpu.core_type<tc>, window_params = [{transform_indices = @transform_0, window_bounds = array<i64: 4, 256>}, {pipeline_mode = #tpu.pipeline_mode<synchronous>, transform_indices = @transform_1, window_bounds = array<i64: 9, 256>}, {pipeline_mode = #tpu.pipeline_mode<synchronous>, transform_indices = @transform_2, window_bounds = array<i64: 8, 9>}, {pipeline_mode = #tpu.pipeline_mode<synchronous>, transform_indices = @transform_3, window_bounds = array<i64: 8, 1>}, {pipeline_mode = #tpu.pipeline_mode<synchronous>, transform_indices = @transform_4, window_bounds = array<i64: 8, 72>}, {pipeline_mode = #tpu.pipeline_mode<synchronous>, transform_indices = @transform_5, window_bounds = array<i64: 8, 1>}, {pipeline_mode = #tpu.pipeline_mode<synchronous>, transform_indices = @transform_6, window_bounds = array<i64: 2, 8>}, {pipeline_mode = #tpu.pipeline_mode<synchronous>, transform_indices = @transform_7, window_bounds = array<i64: 2, 1>}, {pipeline_mode = #tpu.pipeline_mode<synchronous>, transform_indices = @transform_8, window_bounds = array<i64: 8, 45>}, {pipeline_mode = #tpu.pipeline_mode<synchronous>, transform_indices = @transform_9, window_bounds = array<i64: 8, 1>}, {pipeline_mode = #tpu.pipeline_mode<synchronous>, transform_indices = @transform_10, window_bounds = array<i64: 8, 72>}, {pipeline_mode = #tpu.pipeline_mode<synchronous>, transform_indices = @transform_11, window_bounds = array<i64: 8, 1>}, {pipeline_mode = #tpu.pipeline_mode<synchronous>, transform_indices = @transform_12, window_bounds = array<i64: 1, 8>}, {pipeline_mode = #tpu.pipeline_mode<synchronous>, transform_indices = @transform_13, window_bounds = array<i64: 1, 1>}, {transform_indices = @transform_14, window_bounds = array<i64: 2, 256>}, {transform_indices = @transform_15, window_bounds = array<i64: 1, 256>}]} {
    %c0 = arith.constant 0 : index
    %c0_0 = arith.constant 0 : index
    %0 = vector.load %arg1[%c0, %c0_0] : memref<4x256xf32, #tpu.memory_space<vmem>>, vector<4x256xf32>
    %1 = vector.extract_strided_slice %0 {offsets = [0, 0], sizes = [1, 256], strides = [1, 1]} : vector<4x256xf32> to vector<1x256xf32>
    %c17_i32 = arith.constant 17 : i32
    %2 = tpu.dynamic_rotate %1 by %c17_i32 dim 1 : vector<1x256xf32>, i32 -> vector<1x256xf32>
    %c0_1 = arith.constant 0 : index
    %c0_2 = arith.constant 0 : index
    %3 = vector.load %arg2[%c0_1, %c0_2] : memref<9x256xf32, #tpu.memory_space<vmem>>, vector<1x256xf32>
    %4 = arith.mulf %2, %3 : vector<1x256xf32>
    %c16_i32 = arith.constant 16 : i32
    %5 = tpu.dynamic_rotate %1 by %c16_i32 dim 1 : vector<1x256xf32>, i32 -> vector<1x256xf32>
    %c1 = arith.constant 1 : index
    %c0_3 = arith.constant 0 : index
    %6 = vector.load %arg2[%c1, %c0_3] : memref<9x256xf32, #tpu.memory_space<vmem>>, vector<1x256xf32>
    %7 = arith.mulf %5, %6 : vector<1x256xf32>
    %c15_i32 = arith.constant 15 : i32
    %8 = tpu.dynamic_rotate %1 by %c15_i32 dim 1 : vector<1x256xf32>, i32 -> vector<1x256xf32>
    %c2 = arith.constant 2 : index
    %c0_4 = arith.constant 0 : index
    %9 = vector.load %arg2[%c2, %c0_4] : memref<9x256xf32, #tpu.memory_space<vmem>>, vector<1x256xf32>
    %10 = arith.mulf %8, %9 : vector<1x256xf32>
    %c1_i32 = arith.constant 1 : i32
    %11 = tpu.dynamic_rotate %1 by %c1_i32 dim 1 : vector<1x256xf32>, i32 -> vector<1x256xf32>
    %c3 = arith.constant 3 : index
    %c0_5 = arith.constant 0 : index
    %12 = vector.load %arg2[%c3, %c0_5] : memref<9x256xf32, #tpu.memory_space<vmem>>, vector<1x256xf32>
    %13 = arith.mulf %11, %12 : vector<1x256xf32>
    %c255_i32 = arith.constant 255 : i32
    %14 = tpu.dynamic_rotate %1 by %c255_i32 dim 1 : vector<1x256xf32>, i32 -> vector<1x256xf32>
    %c5 = arith.constant 5 : index
    %c0_6 = arith.constant 0 : index
    %15 = vector.load %arg2[%c5, %c0_6] : memref<9x256xf32, #tpu.memory_space<vmem>>, vector<1x256xf32>
    %16 = arith.mulf %14, %15 : vector<1x256xf32>
    %c241_i32 = arith.constant 241 : i32
    %17 = tpu.dynamic_rotate %1 by %c241_i32 dim 1 : vector<1x256xf32>, i32 -> vector<1x256xf32>
    %c6 = arith.constant 6 : index
    %c0_7 = arith.constant 0 : index
    %18 = vector.load %arg2[%c6, %c0_7] : memref<9x256xf32, #tpu.memory_space<vmem>>, vector<1x256xf32>
    %19 = arith.mulf %17, %18 : vector<1x256xf32>
    %c240_i32 = arith.constant 240 : i32
    %20 = tpu.dynamic_rotate %1 by %c240_i32 dim 1 : vector<1x256xf32>, i32 -> vector<1x256xf32>
    %c7 = arith.constant 7 : index
    %c0_8 = arith.constant 0 : index
    %21 = vector.load %arg2[%c7, %c0_8] : memref<9x256xf32, #tpu.memory_space<vmem>>, vector<1x256xf32>
    %22 = arith.mulf %20, %21 : vector<1x256xf32>
    %c239_i32 = arith.constant 239 : i32
    %23 = tpu.dynamic_rotate %1 by %c239_i32 dim 1 : vector<1x256xf32>, i32 -> vector<1x256xf32>
    %c8 = arith.constant 8 : index
    %c0_9 = arith.constant 0 : index
    %24 = vector.load %arg2[%c8, %c0_9] : memref<9x256xf32, #tpu.memory_space<vmem>>, vector<1x256xf32>
    %25 = arith.mulf %23, %24 : vector<1x256xf32>
    %26 = tpu.concatenate %4, %7, %10, %13, %1, %16, %19, %22, %25 in 0 : vector<1x256xf32>, vector<1x256xf32>, vector<1x256xf32>, vector<1x256xf32>, vector<1x256xf32>, vector<1x256xf32>, vector<1x256xf32>, vector<1x256xf32>, vector<1x256xf32> -> vector<9x256xf32>
    %c0_10 = arith.constant 0 : index
    %c0_11 = arith.constant 0 : index
    %27 = vector.load %arg3[%c0_10, %c0_11] : memref<8x9xf32, #tpu.memory_space<vmem>>, vector<8x9xf32>
    %cst = arith.constant dense<0.000000e+00> : vector<8x256xf32>
    %28 = tpu.matmul %27, %26, %cst {dimension_numbers = #tpu.dot_dimension_numbers<[1], [0], [0], [1], [0, 0, 1, 1], [], []>} : vector<8x9xf32>, vector<9x256xf32>, vector<8x256xf32> -> vector<8x256xf32>
    %c0_12 = arith.constant 0 : index
    %c0_13 = arith.constant 0 : index
    %29 = vector.load %arg4[%c0_12, %c0_13] : memref<8x1xf32, #tpu.memory_space<vmem>>, vector<8x1xf32>
    %30 = vector.broadcast %29 : vector<8x1xf32> to vector<8x256xf32>
    %31 = arith.addf %28, %30 : vector<8x256xf32>
    %cst_14 = arith.constant 0.000000e+00 : f32
    %32 = vector.broadcast %cst_14 : f32 to vector<8x256xf32>
    %33 = arith.maximumf %31, %32 : vector<8x256xf32>
    %c17_i32_15 = arith.constant 17 : i32
    %34 = tpu.dynamic_rotate %33 by %c17_i32_15 dim 1 : vector<8x256xf32>, i32 -> vector<8x256xf32>
    %c0_16 = arith.constant 0 : index
    %c0_17 = arith.constant 0 : index
    %35 = vector.load %arg2[%c0_16, %c0_17] : memref<9x256xf32, #tpu.memory_space<vmem>>, vector<1x256xf32>
    %36 = vector.broadcast %35 : vector<1x256xf32> to vector<8x256xf32>
    %37 = arith.mulf %34, %36 : vector<8x256xf32>
    %c16_i32_18 = arith.constant 16 : i32
    %38 = tpu.dynamic_rotate %33 by %c16_i32_18 dim 1 : vector<8x256xf32>, i32 -> vector<8x256xf32>
    %c1_19 = arith.constant 1 : index
    %c0_20 = arith.constant 0 : index
    %39 = vector.load %arg2[%c1_19, %c0_20] : memref<9x256xf32, #tpu.memory_space<vmem>>, vector<1x256xf32>
    %40 = vector.broadcast %39 : vector<1x256xf32> to vector<8x256xf32>
    %41 = arith.mulf %38, %40 : vector<8x256xf32>
    %c15_i32_21 = arith.constant 15 : i32
    %42 = tpu.dynamic_rotate %33 by %c15_i32_21 dim 1 : vector<8x256xf32>, i32 -> vector<8x256xf32>
    %c2_22 = arith.constant 2 : index
    %c0_23 = arith.constant 0 : index
    %43 = vector.load %arg2[%c2_22, %c0_23] : memref<9x256xf32, #tpu.memory_space<vmem>>, vector<1x256xf32>
    %44 = vector.broadcast %43 : vector<1x256xf32> to vector<8x256xf32>
    %45 = arith.mulf %42, %44 : vector<8x256xf32>
    %c1_i32_24 = arith.constant 1 : i32
    %46 = tpu.dynamic_rotate %33 by %c1_i32_24 dim 1 : vector<8x256xf32>, i32 -> vector<8x256xf32>
    %c3_25 = arith.constant 3 : index
    %c0_26 = arith.constant 0 : index
    %47 = vector.load %arg2[%c3_25, %c0_26] : memref<9x256xf32, #tpu.memory_space<vmem>>, vector<1x256xf32>
    %48 = vector.broadcast %47 : vector<1x256xf32> to vector<8x256xf32>
    %49 = arith.mulf %46, %48 : vector<8x256xf32>
    %c255_i32_27 = arith.constant 255 : i32
    %50 = tpu.dynamic_rotate %33 by %c255_i32_27 dim 1 : vector<8x256xf32>, i32 -> vector<8x256xf32>
    %c5_28 = arith.constant 5 : index
    %c0_29 = arith.constant 0 : index
    %51 = vector.load %arg2[%c5_28, %c0_29] : memref<9x256xf32, #tpu.memory_space<vmem>>, vector<1x256xf32>
    %52 = vector.broadcast %51 : vector<1x256xf32> to vector<8x256xf32>
    %53 = arith.mulf %50, %52 : vector<8x256xf32>
    %c241_i32_30 = arith.constant 241 : i32
    %54 = tpu.dynamic_rotate %33 by %c241_i32_30 dim 1 : vector<8x256xf32>, i32 -> vector<8x256xf32>
    %c6_31 = arith.constant 6 : index
    %c0_32 = arith.constant 0 : index
    %55 = vector.load %arg2[%c6_31, %c0_32] : memref<9x256xf32, #tpu.memory_space<vmem>>, vector<1x256xf32>
    %56 = vector.broadcast %55 : vector<1x256xf32> to vector<8x256xf32>
    %57 = arith.mulf %54, %56 : vector<8x256xf32>
    %c240_i32_33 = arith.constant 240 : i32
    %58 = tpu.dynamic_rotate %33 by %c240_i32_33 dim 1 : vector<8x256xf32>, i32 -> vector<8x256xf32>
    %c7_34 = arith.constant 7 : index
    %c0_35 = arith.constant 0 : index
    %59 = vector.load %arg2[%c7_34, %c0_35] : memref<9x256xf32, #tpu.memory_space<vmem>>, vector<1x256xf32>
    %60 = vector.broadcast %59 : vector<1x256xf32> to vector<8x256xf32>
    %61 = arith.mulf %58, %60 : vector<8x256xf32>
    %c239_i32_36 = arith.constant 239 : i32
    %62 = tpu.dynamic_rotate %33 by %c239_i32_36 dim 1 : vector<8x256xf32>, i32 -> vector<8x256xf32>
    %c8_37 = arith.constant 8 : index
    %c0_38 = arith.constant 0 : index
    %63 = vector.load %arg2[%c8_37, %c0_38] : memref<9x256xf32, #tpu.memory_space<vmem>>, vector<1x256xf32>
    %64 = vector.broadcast %63 : vector<1x256xf32> to vector<8x256xf32>
    %65 = arith.mulf %62, %64 : vector<8x256xf32>
    %66 = tpu.concatenate %37, %41, %45, %49, %33, %53, %57, %61, %65 in 0 : vector<8x256xf32>, vector<8x256xf32>, vector<8x256xf32>, vector<8x256xf32>, vector<8x256xf32>, vector<8x256xf32>, vector<8x256xf32>, vector<8x256xf32>, vector<8x256xf32> -> vector<72x256xf32>
    %c0_39 = arith.constant 0 : index
    %c0_40 = arith.constant 0 : index
    %67 = vector.load %arg5[%c0_39, %c0_40] : memref<8x72xf32, #tpu.memory_space<vmem>>, vector<8x72xf32>
    %cst_41 = arith.constant dense<0.000000e+00> : vector<8x256xf32>
    %68 = tpu.matmul %67, %66, %cst_41 {dimension_numbers = #tpu.dot_dimension_numbers<[1], [0], [0], [1], [0, 0, 1, 1], [], []>} : vector<8x72xf32>, vector<72x256xf32>, vector<8x256xf32> -> vector<8x256xf32>
    %c0_42 = arith.constant 0 : index
    %c0_43 = arith.constant 0 : index
    %69 = vector.load %arg6[%c0_42, %c0_43] : memref<8x1xf32, #tpu.memory_space<vmem>>, vector<8x1xf32>
    %70 = vector.broadcast %69 : vector<8x1xf32> to vector<8x256xf32>
    %71 = arith.addf %68, %70 : vector<8x256xf32>
    %cst_44 = arith.constant 0.000000e+00 : f32
    %72 = vector.broadcast %cst_44 : f32 to vector<8x256xf32>
    %73 = arith.maximumf %71, %72 : vector<8x256xf32>
    %c0_45 = arith.constant 0 : index
    %c0_46 = arith.constant 0 : index
    %74 = vector.load %arg7[%c0_45, %c0_46] : memref<2x8xf32, #tpu.memory_space<vmem>>, vector<2x8xf32>
    %cst_47 = arith.constant dense<0.000000e+00> : vector<2x256xf32>
    %75 = tpu.matmul %74, %73, %cst_47 {dimension_numbers = #tpu.dot_dimension_numbers<[1], [0], [0], [1], [0, 0, 1, 1], [], []>} : vector<2x8xf32>, vector<8x256xf32>, vector<2x256xf32> -> vector<2x256xf32>
    %c0_48 = arith.constant 0 : index
    %c0_49 = arith.constant 0 : index
    %76 = vector.load %arg8[%c0_48, %c0_49] : memref<2x1xf32, #tpu.memory_space<vmem>>, vector<2x1xf32>
    %77 = vector.broadcast %76 : vector<2x1xf32> to vector<2x256xf32>
    %78 = arith.addf %75, %77 : vector<2x256xf32>
    %c0_50 = arith.constant 0 : index
    %c0_51 = arith.constant 0 : index
    %79 = vector.load %arg15[%c0_50, %c0_51] : memref<2x256xf32, #tpu.memory_space<vmem>>, vector<2x256xf32>
    tpu.vector_store %arg15[%c0_50, %c0_51], %78 {strides = array<i32>} : memref<2x256xf32, #tpu.memory_space<vmem>>, vector<2x256xf32>,
    %80 = vector.extract_strided_slice %78 {offsets = [0, 0], sizes = [1, 256], strides = [1, 1]} : vector<2x256xf32> to vector<1x256xf32>
    %cst_52 = arith.constant 0.000000e+00 : f32
    %81 = vector.broadcast %cst_52 : f32 to vector<1x256xf32>
    %82 = vector.extract_strided_slice %78 {offsets = [1, 0], sizes = [1, 256], strides = [1, 1]} : vector<2x256xf32> to vector<1x256xf32>
    %83 = arith.cmpf ogt, %82, %80 : vector<1x256xf32>
    %cst_53 = arith.constant 1.000000e+00 : f32
    %84 = vector.broadcast %cst_53 : f32 to vector<1x256xf32>
    %85 = arith.select %83, %84, %81 : vector<1x256xi1>, vector<1x256xf32>
    %86 = tpu.concatenate %0, %85 in 0 : vector<4x256xf32>, vector<1x256xf32> -> vector<5x256xf32>
    %c17_i32_54 = arith.constant 17 : i32
    %87 = tpu.dynamic_rotate %86 by %c17_i32_54 dim 1 : vector<5x256xf32>, i32 -> vector<5x256xf32>
    %c0_55 = arith.constant 0 : index
    %c0_56 = arith.constant 0 : index
    %88 = vector.load %arg2[%c0_55, %c0_56] : memref<9x256xf32, #tpu.memory_space<vmem>>, vector<1x256xf32>
    %89 = vector.broadcast %88 : vector<1x256xf32> to vector<5x256xf32>
    %90 = arith.mulf %87, %89 : vector<5x256xf32>
    %c16_i32_57 = arith.constant 16 : i32
    %91 = tpu.dynamic_rotate %86 by %c16_i32_57 dim 1 : vector<5x256xf32>, i32 -> vector<5x256xf32>
    %c1_58 = arith.constant 1 : index
    %c0_59 = arith.constant 0 : index
    %92 = vector.load %arg2[%c1_58, %c0_59] : memref<9x256xf32, #tpu.memory_space<vmem>>, vector<1x256xf32>
    %93 = vector.broadcast %92 : vector<1x256xf32> to vector<5x256xf32>
    %94 = arith.mulf %91, %93 : vector<5x256xf32>
    %c15_i32_60 = arith.constant 15 : i32
    %95 = tpu.dynamic_rotate %86 by %c15_i32_60 dim 1 : vector<5x256xf32>, i32 -> vector<5x256xf32>
    %c2_61 = arith.constant 2 : index
    %c0_62 = arith.constant 0 : index
    %96 = vector.load %arg2[%c2_61, %c0_62] : memref<9x256xf32, #tpu.memory_space<vmem>>, vector<1x256xf32>
    %97 = vector.broadcast %96 : vector<1x256xf32> to vector<5x256xf32>
    %98 = arith.mulf %95, %97 : vector<5x256xf32>
    %c1_i32_63 = arith.constant 1 : i32
    %99 = tpu.dynamic_rotate %86 by %c1_i32_63 dim 1 : vector<5x256xf32>, i32 -> vector<5x256xf32>
    %c3_64 = arith.constant 3 : index
    %c0_65 = arith.constant 0 : index
    %100 = vector.load %arg2[%c3_64, %c0_65] : memref<9x256xf32, #tpu.memory_space<vmem>>, vector<1x256xf32>
    %101 = vector.broadcast %100 : vector<1x256xf32> to vector<5x256xf32>
    %102 = arith.mulf %99, %101 : vector<5x256xf32>
    %c255_i32_66 = arith.constant 255 : i32
    %103 = tpu.dynamic_rotate %86 by %c255_i32_66 dim 1 : vector<5x256xf32>, i32 -> vector<5x256xf32>
    %c5_67 = arith.constant 5 : index
    %c0_68 = arith.constant 0 : index
    %104 = vector.load %arg2[%c5_67, %c0_68] : memref<9x256xf32, #tpu.memory_space<vmem>>, vector<1x256xf32>
    %105 = vector.broadcast %104 : vector<1x256xf32> to vector<5x256xf32>
    %106 = arith.mulf %103, %105 : vector<5x256xf32>
    %c241_i32_69 = arith.constant 241 : i32
    %107 = tpu.dynamic_rotate %86 by %c241_i32_69 dim 1 : vector<5x256xf32>, i32 -> vector<5x256xf32>
    %c6_70 = arith.constant 6 : index
    %c0_71 = arith.constant 0 : index
    %108 = vector.load %arg2[%c6_70, %c0_71] : memref<9x256xf32, #tpu.memory_space<vmem>>, vector<1x256xf32>
    %109 = vector.broadcast %108 : vector<1x256xf32> to vector<5x256xf32>
    %110 = arith.mulf %107, %109 : vector<5x256xf32>
    %c240_i32_72 = arith.constant 240 : i32
    %111 = tpu.dynamic_rotate %86 by %c240_i32_72 dim 1 : vector<5x256xf32>, i32 -> vector<5x256xf32>
    %c7_73 = arith.constant 7 : index
    %c0_74 = arith.constant 0 : index
    %112 = vector.load %arg2[%c7_73, %c0_74] : memref<9x256xf32, #tpu.memory_space<vmem>>, vector<1x256xf32>
    %113 = vector.broadcast %112 : vector<1x256xf32> to vector<5x256xf32>
    %114 = arith.mulf %111, %113 : vector<5x256xf32>
    %c239_i32_75 = arith.constant 239 : i32
    %115 = tpu.dynamic_rotate %86 by %c239_i32_75 dim 1 : vector<5x256xf32>, i32 -> vector<5x256xf32>
    %c8_76 = arith.constant 8 : index
    %c0_77 = arith.constant 0 : index
    %116 = vector.load %arg2[%c8_76, %c0_77] : memref<9x256xf32, #tpu.memory_space<vmem>>, vector<1x256xf32>
    %117 = vector.broadcast %116 : vector<1x256xf32> to vector<5x256xf32>
    %118 = arith.mulf %115, %117 : vector<5x256xf32>
    %119 = tpu.concatenate %90, %94, %98, %102, %86, %106, %110, %114, %118 in 0 : vector<5x256xf32>, vector<5x256xf32>, vector<5x256xf32>, vector<5x256xf32>, vector<5x256xf32>, vector<5x256xf32>, vector<5x256xf32>, vector<5x256xf32>, vector<5x256xf32> -> vector<45x256xf32>
    %c0_78 = arith.constant 0 : index
    %c0_79 = arith.constant 0 : index
    %120 = vector.load %arg9[%c0_78, %c0_79] : memref<8x45xf32, #tpu.memory_space<vmem>>, vector<8x45xf32>
    %cst_80 = arith.constant dense<0.000000e+00> : vector<8x256xf32>
    %121 = tpu.matmul %120, %119, %cst_80 {dimension_numbers = #tpu.dot_dimension_numbers<[1], [0], [0], [1], [0, 0, 1, 1], [], []>} : vector<8x45xf32>, vector<45x256xf32>, vector<8x256xf32> -> vector<8x256xf32>
    %c0_81 = arith.constant 0 : index
    %c0_82 = arith.constant 0 : index
    %122 = vector.load %arg10[%c0_81, %c0_82] : memref<8x1xf32, #tpu.memory_space<vmem>>, vector<8x1xf32>
    %123 = vector.broadcast %122 : vector<8x1xf32> to vector<8x256xf32>
    %124 = arith.addf %121, %123 : vector<8x256xf32>
    %cst_83 = arith.constant 0.000000e+00 : f32
    %125 = vector.broadcast %cst_83 : f32 to vector<8x256xf32>
    %126 = arith.maximumf %124, %125 : vector<8x256xf32>
    %c17_i32_84 = arith.constant 17 : i32
    %127 = tpu.dynamic_rotate %126 by %c17_i32_84 dim 1 : vector<8x256xf32>, i32 -> vector<8x256xf32>
    %c0_85 = arith.constant 0 : index
    %c0_86 = arith.constant 0 : index
    %128 = vector.load %arg2[%c0_85, %c0_86] : memref<9x256xf32, #tpu.memory_space<vmem>>, vector<1x256xf32>
    %129 = vector.broadcast %128 : vector<1x256xf32> to vector<8x256xf32>
    %130 = arith.mulf %127, %129 : vector<8x256xf32>
    %c16_i32_87 = arith.constant 16 : i32
    %131 = tpu.dynamic_rotate %126 by %c16_i32_87 dim 1 : vector<8x256xf32>, i32 -> vector<8x256xf32>
    %c1_88 = arith.constant 1 : index
    %c0_89 = arith.constant 0 : index
    %132 = vector.load %arg2[%c1_88, %c0_89] : memref<9x256xf32, #tpu.memory_space<vmem>>, vector<1x256xf32>
    %133 = vector.broadcast %132 : vector<1x256xf32> to vector<8x256xf32>
    %134 = arith.mulf %131, %133 : vector<8x256xf32>
    %c15_i32_90 = arith.constant 15 : i32
    %135 = tpu.dynamic_rotate %126 by %c15_i32_90 dim 1 : vector<8x256xf32>, i32 -> vector<8x256xf32>
    %c2_91 = arith.constant 2 : index
    %c0_92 = arith.constant 0 : index
    %136 = vector.load %arg2[%c2_91, %c0_92] : memref<9x256xf32, #tpu.memory_space<vmem>>, vector<1x256xf32>
    %137 = vector.broadcast %136 : vector<1x256xf32> to vector<8x256xf32>
    %138 = arith.mulf %135, %137 : vector<8x256xf32>
    %c1_i32_93 = arith.constant 1 : i32
    %139 = tpu.dynamic_rotate %126 by %c1_i32_93 dim 1 : vector<8x256xf32>, i32 -> vector<8x256xf32>
    %c3_94 = arith.constant 3 : index
    %c0_95 = arith.constant 0 : index
    %140 = vector.load %arg2[%c3_94, %c0_95] : memref<9x256xf32, #tpu.memory_space<vmem>>, vector<1x256xf32>
    %141 = vector.broadcast %140 : vector<1x256xf32> to vector<8x256xf32>
    %142 = arith.mulf %139, %141 : vector<8x256xf32>
    %c255_i32_96 = arith.constant 255 : i32
    %143 = tpu.dynamic_rotate %126 by %c255_i32_96 dim 1 : vector<8x256xf32>, i32 -> vector<8x256xf32>
    %c5_97 = arith.constant 5 : index
    %c0_98 = arith.constant 0 : index
    %144 = vector.load %arg2[%c5_97, %c0_98] : memref<9x256xf32, #tpu.memory_space<vmem>>, vector<1x256xf32>
    %145 = vector.broadcast %144 : vector<1x256xf32> to vector<8x256xf32>
    %146 = arith.mulf %143, %145 : vector<8x256xf32>
    %c241_i32_99 = arith.constant 241 : i32
    %147 = tpu.dynamic_rotate %126 by %c241_i32_99 dim 1 : vector<8x256xf32>, i32 -> vector<8x256xf32>
    %c6_100 = arith.constant 6 : index
    %c0_101 = arith.constant 0 : index
    %148 = vector.load %arg2[%c6_100, %c0_101] : memref<9x256xf32, #tpu.memory_space<vmem>>, vector<1x256xf32>
    %149 = vector.broadcast %148 : vector<1x256xf32> to vector<8x256xf32>
    %150 = arith.mulf %147, %149 : vector<8x256xf32>
    %c240_i32_102 = arith.constant 240 : i32
    %151 = tpu.dynamic_rotate %126 by %c240_i32_102 dim 1 : vector<8x256xf32>, i32 -> vector<8x256xf32>
    %c7_103 = arith.constant 7 : index
    %c0_104 = arith.constant 0 : index
    %152 = vector.load %arg2[%c7_103, %c0_104] : memref<9x256xf32, #tpu.memory_space<vmem>>, vector<1x256xf32>
    %153 = vector.broadcast %152 : vector<1x256xf32> to vector<8x256xf32>
    %154 = arith.mulf %151, %153 : vector<8x256xf32>
    %c239_i32_105 = arith.constant 239 : i32
    %155 = tpu.dynamic_rotate %126 by %c239_i32_105 dim 1 : vector<8x256xf32>, i32 -> vector<8x256xf32>
    %c8_106 = arith.constant 8 : index
    %c0_107 = arith.constant 0 : index
    %156 = vector.load %arg2[%c8_106, %c0_107] : memref<9x256xf32, #tpu.memory_space<vmem>>, vector<1x256xf32>
    %157 = vector.broadcast %156 : vector<1x256xf32> to vector<8x256xf32>
    %158 = arith.mulf %155, %157 : vector<8x256xf32>
    %159 = tpu.concatenate %130, %134, %138, %142, %126, %146, %150, %154, %158 in 0 : vector<8x256xf32>, vector<8x256xf32>, vector<8x256xf32>, vector<8x256xf32>, vector<8x256xf32>, vector<8x256xf32>, vector<8x256xf32>, vector<8x256xf32>, vector<8x256xf32> -> vector<72x256xf32>
    %c0_108 = arith.constant 0 : index
    %c0_109 = arith.constant 0 : index
    %160 = vector.load %arg11[%c0_108, %c0_109] : memref<8x72xf32, #tpu.memory_space<vmem>>, vector<8x72xf32>
    %cst_110 = arith.constant dense<0.000000e+00> : vector<8x256xf32>
    %161 = tpu.matmul %160, %159, %cst_110 {dimension_numbers = #tpu.dot_dimension_numbers<[1], [0], [0], [1], [0, 0, 1, 1], [], []>} : vector<8x72xf32>, vector<72x256xf32>, vector<8x256xf32> -> vector<8x256xf32>
    %c0_111 = arith.constant 0 : index
    %c0_112 = arith.constant 0 : index
    %162 = vector.load %arg12[%c0_111, %c0_112] : memref<8x1xf32, #tpu.memory_space<vmem>>, vector<8x1xf32>
    %163 = vector.broadcast %162 : vector<8x1xf32> to vector<8x256xf32>
    %164 = arith.addf %161, %163 : vector<8x256xf32>
    %cst_113 = arith.constant 0.000000e+00 : f32
    %165 = vector.broadcast %cst_113 : f32 to vector<8x256xf32>
    %166 = arith.maximumf %164, %165 : vector<8x256xf32>
    %c0_114 = arith.constant 0 : index
    %c0_115 = arith.constant 0 : index
    %167 = vector.load %arg13[%c0_114, %c0_115] : memref<1x8xf32, #tpu.memory_space<vmem>>, vector<1x8xf32>
    %cst_116 = arith.constant dense<0.000000e+00> : vector<1x256xf32>
    %168 = tpu.matmul %167, %166, %cst_116 {dimension_numbers = #tpu.dot_dimension_numbers<[1], [0], [0], [1], [0, 0, 1, 1], [], []>} : vector<1x8xf32>, vector<8x256xf32>, vector<1x256xf32> -> vector<1x256xf32>
    %c0_117 = arith.constant 0 : index
    %c0_118 = arith.constant 0 : index
    %169 = vector.load %arg14[%c0_117, %c0_118] : memref<1x1xf32, #tpu.memory_space<vmem>>, vector<1x1xf32>
    %170 = vector.broadcast %169 : vector<1x1xf32> to vector<1x256xf32>
    %171 = arith.addf %168, %170 : vector<1x256xf32>
    %c0_119 = arith.constant 0 : index
    %c0_120 = arith.constant 0 : index
    %172 = vector.load %arg16[%c0_119, %c0_120] : memref<1x256xf32, #tpu.memory_space<vmem>>, vector<1x256xf32>
    tpu.vector_store %arg16[%c0_119, %c0_120], %171 {strides = array<i32>} : memref<1x256xf32, #tpu.memory_space<vmem>>, vector<1x256xf32>,
    return
  }
  func.func @transform_0(%arg0: i32) -> (i32, i32) {
    %c0_i32 = arith.constant 0 : i32
    %c0_i32_0 = arith.constant 0 : i32
    return %c0_i32, %arg0 : i32, i32
  }
  func.func @transform_1(%arg0: i32) -> (i32, i32) {
    %c0_i32 = arith.constant 0 : i32
    %c0_i32_0 = arith.constant 0 : i32
    %c0_i32_1 = arith.constant 0 : i32
    return %c0_i32, %c0_i32_0 : i32, i32
  }
  func.func @transform_2(%arg0: i32) -> (i32, i32) {
    %c0_i32 = arith.constant 0 : i32
    %c0_i32_0 = arith.constant 0 : i32
    %c0_i32_1 = arith.constant 0 : i32
    return %c0_i32, %c0_i32_0 : i32, i32
  }
  func.func @transform_3(%arg0: i32) -> (i32, i32) {
    %c0_i32 = arith.constant 0 : i32
    %c0_i32_0 = arith.constant 0 : i32
    %c0_i32_1 = arith.constant 0 : i32
    return %c0_i32, %c0_i32_0 : i32, i32
  }
  func.func @transform_4(%arg0: i32) -> (i32, i32) {
    %c0_i32 = arith.constant 0 : i32
    %c0_i32_0 = arith.constant 0 : i32
    %c0_i32_1 = arith.constant 0 : i32
    return %c0_i32, %c0_i32_0 : i32, i32
  }
  func.func @transform_5(%arg0: i32) -> (i32, i32) {
    %c0_i32 = arith.constant 0 : i32
    %c0_i32_0 = arith.constant 0 : i32
    %c0_i32_1 = arith.constant 0 : i32
    return %c0_i32, %c0_i32_0 : i32, i32
  }
  func.func @transform_6(%arg0: i32) -> (i32, i32) {
    %c0_i32 = arith.constant 0 : i32
    %c0_i32_0 = arith.constant 0 : i32
    %c0_i32_1 = arith.constant 0 : i32
    return %c0_i32, %c0_i32_0 : i32, i32
  }
  func.func @transform_7(%arg0: i32) -> (i32, i32) {
    %c0_i32 = arith.constant 0 : i32
    %c0_i32_0 = arith.constant 0 : i32
    %c0_i32_1 = arith.constant 0 : i32
    return %c0_i32, %c0_i32_0 : i32, i32
  }
  func.func @transform_8(%arg0: i32) -> (i32, i32) {
    %c0_i32 = arith.constant 0 : i32
    %c0_i32_0 = arith.constant 0 : i32
    %c0_i32_1 = arith.constant 0 : i32
    return %c0_i32, %c0_i32_0 : i32, i32
  }
  func.func @transform_9(%arg0: i32) -> (i32, i32) {
    %c0_i32 = arith.constant 0 : i32
    %c0_i32_0 = arith.constant 0 : i32
    %c0_i32_1 = arith.constant 0 : i32
    return %c0_i32, %c0_i32_0 : i32, i32
  }
  func.func @transform_10(%arg0: i32) -> (i32, i32) {
    %c0_i32 = arith.constant 0 : i32
    %c0_i32_0 = arith.constant 0 : i32
    %c0_i32_1 = arith.constant 0 : i32
    return %c0_i32, %c0_i32_0 : i32, i32
  }
  func.func @transform_11(%arg0: i32) -> (i32, i32) {
    %c0_i32 = arith.constant 0 : i32
    %c0_i32_0 = arith.constant 0 : i32
    %c0_i32_1 = arith.constant 0 : i32
    return %c0_i32, %c0_i32_0 : i32, i32
  }
  func.func @transform_12(%arg0: i32) -> (i32, i32) {
    %c0_i32 = arith.constant 0 : i32
    %c0_i32_0 = arith.constant 0 : i32
    %c0_i32_1 = arith.constant 0 : i32
    return %c0_i32, %c0_i32_0 : i32, i32
  }
  func.func @transform_13(%arg0: i32) -> (i32, i32) {
    %c0_i32 = arith.constant 0 : i32
    %c0_i32_0 = arith.constant 0 : i32
    %c0_i32_1 = arith.constant 0 : i32
    return %c0_i32, %c0_i32_0 : i32, i32
  }
  func.func @transform_14(%arg0: i32) -> (i32, i32) {
    %c0_i32 = arith.constant 0 : i32
    %c0_i32_0 = arith.constant 0 : i32
    return %c0_i32, %arg0 : i32, i32
  }
  func.func @transform_15(%arg0: i32) -> (i32, i32) {
    %c0_i32 = arith.constant 0 : i32
    %c0_i32_0 = arith.constant 0 : i32
    return %c0_i32, %arg0 : i32, i32
  }
}

</mosaic_0001>

<llo_original>
// kernel: scorrnet_forward.1
$region0: #{scorrnet_forward.1}
  #allocation0 [shape = 'u32[]', space=smem, size = 0x4, offset = 0x4, fixed_abs, tag = 'smem constant byte address 0x4 - core index']
  #allocation1 [shape = 'u32[72,128]{1,0:T(1,128)}', space=vmem, size = 0x9000, scoped, tag = 'internal scratch']
  #allocation2 [shape = 'f32[1,1]{1,0:T(1,128)S(1)}', space=vmem, size = 0x200, scoped, tag = 'scoped memory for scorrnet_forward.1']
  %s0 = inlined_call_operand.vmem [shape: f32[4,512], index: 0, kind: input, shape index: {}]
  %s1 = inlined_call_operand.vmem [shape: f32[9,256], index: 1, kind: input, shape index: {}]
  %s2 = inlined_call_operand.vmem [shape: f32[8,9], index: 2, kind: input, shape index: {}]
  %s3 = inlined_call_operand.vmem [shape: f32[8,1], index: 3, kind: input, shape index: {}]
  %s4 = inlined_call_operand.vmem [shape: f32[8,72], index: 4, kind: input, shape index: {}]
  %s5 = inlined_call_operand.vmem [shape: f32[8,1], index: 5, kind: input, shape index: {}]
  %s6 = inlined_call_operand.vmem [shape: f32[2,8], index: 6, kind: input, shape index: {}]
  %s7 = inlined_call_operand.vmem [shape: f32[2,1], index: 7, kind: input, shape index: {}]
  %s8 = inlined_call_operand.vmem [shape: f32[8,45], index: 8, kind: input, shape index: {}]
  %s9 = inlined_call_operand.vmem [shape: f32[8,1], index: 9, kind: input, shape index: {}]
  %s10 = inlined_call_operand.vmem [shape: f32[8,72], index: 10, kind: input, shape index: {}]
  %s11 = inlined_call_operand.vmem [shape: f32[8,1], index: 11, kind: input, shape index: {}]
  %s12 = inlined_call_operand.vmem [shape: f32[1,8], index: 12, kind: input, shape index: {}]
  %s13 = inlined_call_operand.<no memory space> [shape: f32[1,1], index: 13, kind: input, shape index: {}]
  %s14 = inlined_call_operand.vmem [shape: f32[2,512], index: 14, kind: output, shape index: {0}]
  %s15 = inlined_call_operand.vmem [shape: f32[1,512], index: 15, kind: output, shape index: {1}]
  %16 = xla_tuple %s14, %s15
  %s17 = sld [smem:[#allocation0]]
  $region97: #{scorrnet_forward.1} parent=0
    _
  %s19 = ssub.s32 1, %s17
  %s20 = scalar_select 0, %s19, %s17
  %v21 = vstv %s13
  %22 = vst [vmem:[#allocation2] sm:$0x1] %v21
  loop: start=0, step=1, limit=4
  $region2: #{scorrnet_forward.1} parent=0 // loop_pre_header
    _
  $region3: #{scorrnet_forward.1} parent=0 // loop_header
    %s24 = sphi 0, %s28
    %p25 = scmp.ge.s32.totalorder %s24, 4
    %s34 = sphi 0, %s36
    %s37 = sphi 0, %s34
    %s38 = sphi 0, %s37
    %s54 = sphi 0, %s38
    %s58 = sphi 0, %s58
    %s60 = sphi 0, %s58
    %s61 = sphi 0, %s60
    %s75 = sphi 0, %s61
    %s79 = sphi 0, %s79
    %s81 = sphi 0, %s79
    %s82 = sphi 0, %s81
    %s96 = sphi 0, %s82
    %s100 = sphi 0, %s100
    %s102 = sphi 0, %s100
    %s103 = sphi 0, %s102
    %s117 = sphi 0, %s103
    %s121 = sphi 0, %s121
    %s123 = sphi 0, %s121
    %s124 = sphi 0, %s123
    %s138 = sphi 0, %s124
    %s142 = sphi 0, %s142
    %s144 = sphi 0, %s142
    %s145 = sphi 0, %s144
    %s159 = sphi 0, %s145
    %s163 = sphi 0, %s163
    %s165 = sphi 0, %s163
    %s166 = sphi 0, %s165
    %s180 = sphi 0, %s166
    %s184 = sphi 0, %s184
    %s186 = sphi 0, %s184
    %s187 = sphi 0, %s186
    %s201 = sphi 0, %s187
    %s205 = sphi 0, %s205
    %s207 = sphi 0, %s205
    %s208 = sphi 0, %s207
    %s222 = sphi 0, %s208
    %s226 = sphi 0, %s226
    %s228 = sphi 0, %s226
    %s229 = sphi 0, %s228
    %s243 = sphi 0, %s229
    %s247 = sphi 0, %s247
    %s249 = sphi 0, %s247
    %s250 = sphi 0, %s249
    %s264 = sphi 0, %s250
    %s268 = sphi 0, %s268
    %s270 = sphi 0, %s268
    %s271 = sphi 0, %s270
    %s285 = sphi 0, %s271
    %s289 = sphi 0, %s289
    %s291 = sphi 0, %s289
    %s292 = sphi 0, %s291
    %s306 = sphi 0, %s292
    %s310 = sphi 0, %s310
    %s312 = sphi 0, %s310
    %s313 = sphi 0, %s312
    %s327 = sphi 0, %s313
    %s333 = sphi 0, %s335
    %s336 = sphi 0, %s333
    %s337 = sphi 0, %s336
    %s353 = sphi 0, %s337
    %s359 = sphi 0, %s361
    %s362 = sphi 0, %s359
    %s363 = sphi 0, %s362
    %s379 = sphi 0, %s363
  $region4: #{scorrnet_forward.1} parent=0 // loop_header_branch
    %27 = sbr.rel (%p25) target = $region8
  $region5: #{scorrnet_forward.1} parent=0 // loop_body
    %s29 = ssub.s32 %s24, 1
    %s30 = ssub.s32 %s24, 2
    %s31 = sadd.s32 %s24, 1
    %s32 = ssub.s32 %s24, %s31
    %p33 = scmp.eq.s32.totalorder %s32, 0
    %s35 = sadd.s32 %s34, 1
    %s36 = scalar_select %p33, %s34, %s35
    %p39 = pneg %p33
    %p40 = scmp.eq.s32.totalorder %s24, 1
    %p41 = por %p39, %p40
    %p42 = scmp.ne.s32.totalorder %s34, %s37
    %p43 = scmp.eq.s32.totalorder %s24, 0
    %p44 = por %p42, %p43
    %p45 = scmp.ne.s32.totalorder %s34, %s37
    %p46 = scmp.eq.s32.totalorder %s29, 1
    %p47 = por %p45, %p46
    %p48 = scmp.ne.s32.totalorder %s37, %s38
    %p49 = scmp.eq.s32.totalorder %s29, 0
    %p50 = por %p48, %p49
    %p51 = scmp.ne.s32.totalorder %s37, %s38
    %p52 = scmp.eq.s32.totalorder %s30, 1
    %p53 = por %p51, %p52
    %p55 = scmp.ne.s32.totalorder %s38, %s54
    %p56 = scmp.eq.s32.totalorder %s30, 0
    %p57 = por %p55, %p56
    %s59 = sadd.s32 %s58, 1
    %p62 = scmp.eq.s32.totalorder %s24, 1
    %p63 = scmp.ne.s32.totalorder %s58, %s60
    %p64 = scmp.eq.s32.totalorder %s24, 0
    %p65 = por %p63, %p64
    %p66 = scmp.ne.s32.totalorder %s58, %s60
    %p67 = scmp.eq.s32.totalorder %s29, 1
    %p68 = por %p66, %p67
    %p69 = scmp.ne.s32.totalorder %s60, %s61
    %p70 = scmp.eq.s32.totalorder %s29, 0
    %p71 = por %p69, %p70
    %p72 = scmp.ne.s32.totalorder %s60, %s61
    %p73 = scmp.eq.s32.totalorder %s30, 1
    %p74 = por %p72, %p73
    %p76 = scmp.ne.s32.totalorder %s61, %s75
    %p77 = scmp.eq.s32.totalorder %s30, 0
    %p78 = por %p76, %p77
    %s80 = sadd.s32 %s79, 1
    %p83 = scmp.eq.s32.totalorder %s24, 1
    %p84 = scmp.ne.s32.totalorder %s79, %s81
    %p85 = scmp.eq.s32.totalorder %s24, 0
    %p86 = por %p84, %p85
    %p87 = scmp.ne.s32.totalorder %s79, %s81
    %p88 = scmp.eq.s32.totalorder %s29, 1
    %p89 = por %p87, %p88
    %p90 = scmp.ne.s32.totalorder %s81, %s82
    %p91 = scmp.eq.s32.totalorder %s29, 0
    %p92 = por %p90, %p91
    %p93 = scmp.ne.s32.totalorder %s81, %s82
    %p94 = scmp.eq.s32.totalorder %s30, 1
    %p95 = por %p93, %p94
    %p97 = scmp.ne.s32.totalorder %s82, %s96
    %p98 = scmp.eq.s32.totalorder %s30, 0
    %p99 = por %p97, %p98
    %s101 = sadd.s32 %s100, 1
    %p104 = scmp.eq.s32.totalorder %s24, 1
    %p105 = scmp.ne.s32.totalorder %s100, %s102
    %p106 = scmp.eq.s32.totalorder %s24, 0
    %p107 = por %p105, %p106
    %p108 = scmp.ne.s32.totalorder %s100, %s102
    %p109 = scmp.eq.s32.totalorder %s29, 1
    %p110 = por %p108, %p109
    %p111 = scmp.ne.s32.totalorder %s102, %s103
    %p112 = scmp.eq.s32.totalorder %s29, 0
    %p113 = por %p111, %p112
    %p114 = scmp.ne.s32.totalorder %s102, %s103
    %p115 = scmp.eq.s32.totalorder %s30, 1
    %p116 = por %p114, %p115
    %p118 = scmp.ne.s32.totalorder %s103, %s117
    %p119 = scmp.eq.s32.totalorder %s30, 0
    %p120 = por %p118, %p119
    %s122 = sadd.s32 %s121, 1
    %p125 = scmp.eq.s32.totalorder %s24, 1
    %p126 = scmp.ne.s32.totalorder %s121, %s123
    %p127 = scmp.eq.s32.totalorder %s24, 0
    %p128 = por %p126, %p127
    %p129 = scmp.ne.s32.totalorder %s121, %s123
    %p130 = scmp.eq.s32.totalorder %s29, 1
    %p131 = por %p129, %p130
    %p132 = scmp.ne.s32.totalorder %s123, %s124
    %p133 = scmp.eq.s32.totalorder %s29, 0
    %p134 = por %p132, %p133
    %p135 = scmp.ne.s32.totalorder %s123, %s124
    %p136 = scmp.eq.s32.totalorder %s30, 1
    %p137 = por %p135, %p136
    %p139 = scmp.ne.s32.totalorder %s124, %s138
    %p140 = scmp.eq.s32.totalorder %s30, 0
    %p141 = por %p139, %p140
    %s143 = sadd.s32 %s142, 1
    %p146 = scmp.eq.s32.totalorder %s24, 1
    %p147 = scmp.ne.s32.totalorder %s142, %s144
    %p148 = scmp.eq.s32.totalorder %s24, 0
    %p149 = por %p147, %p148
    %p150 = scmp.ne.s32.totalorder %s142, %s144
    %p151 = scmp.eq.s32.totalorder %s29, 1
    %p152 = por %p150, %p151
    %p153 = scmp.ne.s32.totalorder %s144, %s145
    %p154 = scmp.eq.s32.totalorder %s29, 0
    %p155 = por %p153, %p154
    %p156 = scmp.ne.s32.totalorder %s144, %s145
    %p157 = scmp.eq.s32.totalorder %s30, 1
    %p158 = por %p156, %p157
    %p160 = scmp.ne.s32.totalorder %s145, %s159
    %p161 = scmp.eq.s32.totalorder %s30, 0
    %p162 = por %p160, %p161
    %s164 = sadd.s32 %s163, 1
    %p167 = scmp.eq.s32.totalorder %s24, 1
    %p168 = scmp.ne.s32.totalorder %s163, %s165
    %p169 = scmp.eq.s32.totalorder %s24, 0
    %p170 = por %p168, %p169
    %p171 = scmp.ne.s32.totalorder %s163, %s165
    %p172 = scmp.eq.s32.totalorder %s29, 1
    %p173 = por %p171, %p172
    %p174 = scmp.ne.s32.totalorder %s165, %s166
    %p175 = scmp.eq.s32.totalorder %s29, 0
    %p176 = por %p174, %p175
    %p177 = scmp.ne.s32.totalorder %s165, %s166
    %p178 = scmp.eq.s32.totalorder %s30, 1
    %p179 = por %p177, %p178
    %p181 = scmp.ne.s32.totalorder %s166, %s180
    %p182 = scmp.eq.s32.totalorder %s30, 0
    %p183 = por %p181, %p182
    %s185 = sadd.s32 %s184, 1
    %p188 = scmp.eq.s32.totalorder %s24, 1
    %p189 = scmp.ne.s32.totalorder %s184, %s186
    %p190 = scmp.eq.s32.totalorder %s24, 0
    %p191 = por %p189, %p190
    %p192 = scmp.ne.s32.totalorder %s184, %s186
    %p193 = scmp.eq.s32.totalorder %s29, 1
    %p194 = por %p192, %p193
    %p195 = scmp.ne.s32.totalorder %s186, %s187
    %p196 = scmp.eq.s32.totalorder %s29, 0
    %p197 = por %p195, %p196
    %p198 = scmp.ne.s32.totalorder %s186, %s187
    %p199 = scmp.eq.s32.totalorder %s30, 1
    %p200 = por %p198, %p199
    %p202 = scmp.ne.s32.totalorder %s187, %s201
    %p203 = scmp.eq.s32.totalorder %s30, 0
    %p204 = por %p202, %p203
    %s206 = sadd.s32 %s205, 1
    %p209 = scmp.eq.s32.totalorder %s24, 1
    %p210 = scmp.ne.s32.totalorder %s205, %s207
    %p211 = scmp.eq.s32.totalorder %s24, 0
    %p212 = por %p210, %p211
    %p213 = scmp.ne.s32.totalorder %s205, %s207
    %p214 = scmp.eq.s32.totalorder %s29, 1
    %p215 = por %p213, %p214
    %p216 = scmp.ne.s32.totalorder %s207, %s208
    %p217 = scmp.eq.s32.totalorder %s29, 0
    %p218 = por %p216, %p217
    %p219 = scmp.ne.s32.totalorder %s207, %s208
    %p220 = scmp.eq.s32.totalorder %s30, 1
    %p221 = por %p219, %p220
    %p223 = scmp.ne.s32.totalorder %s208, %s222
    %p224 = scmp.eq.s32.totalorder %s30, 0
    %p225 = por %p223, %p224
    %s227 = sadd.s32 %s226, 1
    %p230 = scmp.eq.s32.totalorder %s24, 1
    %p231 = scmp.ne.s32.totalorder %s226, %s228
    %p232 = scmp.eq.s32.totalorder %s24, 0
    %p233 = por %p231, %p232
    %p234 = scmp.ne.s32.totalorder %s226, %s228
    %p235 = scmp.eq.s32.totalorder %s29, 1
    %p236 = por %p234, %p235
    %p237 = scmp.ne.s32.totalorder %s228, %s229
    %p238 = scmp.eq.s32.totalorder %s29, 0
    %p239 = por %p237, %p238
    %p240 = scmp.ne.s32.totalorder %s228, %s229
    %p241 = scmp.eq.s32.totalorder %s30, 1
    %p242 = por %p240, %p241
    %p244 = scmp.ne.s32.totalorder %s229, %s243
    %p245 = scmp.eq.s32.totalorder %s30, 0
    %p246 = por %p244, %p245
    %s248 = sadd.s32 %s247, 1
    %p251 = scmp.eq.s32.totalorder %s24, 1
    %p252 = scmp.ne.s32.totalorder %s247, %s249
    %p253 = scmp.eq.s32.totalorder %s24, 0
    %p254 = por %p252, %p253
    %p255 = scmp.ne.s32.totalorder %s247, %s249
    %p256 = scmp.eq.s32.totalorder %s29, 1
    %p257 = por %p255, %p256
    %p258 = scmp.ne.s32.totalorder %s249, %s250
    %p259 = scmp.eq.s32.totalorder %s29, 0
    %p260 = por %p258, %p259
    %p261 = scmp.ne.s32.totalorder %s249, %s250
    %p262 = scmp.eq.s32.totalorder %s30, 1
    %p263 = por %p261, %p262
    %p265 = scmp.ne.s32.totalorder %s250, %s264
    %p266 = scmp.eq.s32.totalorder %s30, 0
    %p267 = por %p265, %p266
    %s269 = sadd.s32 %s268, 1
    %p272 = scmp.eq.s32.totalorder %s24, 1
    %p273 = scmp.ne.s32.totalorder %s268, %s270
    %p274 = scmp.eq.s32.totalorder %s24, 0
    %p275 = por %p273, %p274
    %p276 = scmp.ne.s32.totalorder %s268, %s270
    %p277 = scmp.eq.s32.totalorder %s29, 1
    %p278 = por %p276, %p277
    %p279 = scmp.ne.s32.totalorder %s270, %s271
    %p280 = scmp.eq.s32.totalorder %s29, 0
    %p281 = por %p279, %p280
    %p282 = scmp.ne.s32.totalorder %s270, %s271
    %p283 = scmp.eq.s32.totalorder %s30, 1
    %p284 = por %p282, %p283
    %p286 = scmp.ne.s32.totalorder %s271, %s285
    %p287 = scmp.eq.s32.totalorder %s30, 0
    %p288 = por %p286, %p287
    %s290 = sadd.s32 %s289, 1
    %p293 = scmp.eq.s32.totalorder %s24, 1
    %p294 = scmp.ne.s32.totalorder %s289, %s291
    %p295 = scmp.eq.s32.totalorder %s24, 0
    %p296 = por %p294, %p295
    %p297 = scmp.ne.s32.totalorder %s289, %s291
    %p298 = scmp.eq.s32.totalorder %s29, 1
    %p299 = por %p297, %p298
    %p300 = scmp.ne.s32.totalorder %s291, %s292
    %p301 = scmp.eq.s32.totalorder %s29, 0
    %p302 = por %p300, %p301
    %p303 = scmp.ne.s32.totalorder %s291, %s292
    %p304 = scmp.eq.s32.totalorder %s30, 1
    %p305 = por %p303, %p304
    %p307 = scmp.ne.s32.totalorder %s292, %s306
    %p308 = scmp.eq.s32.totalorder %s30, 0
    %p309 = por %p307, %p308
    %s311 = sadd.s32 %s310, 1
    %p314 = scmp.eq.s32.totalorder %s24, 1
    %p315 = scmp.ne.s32.totalorder %s310, %s312
    %p316 = scmp.eq.s32.totalorder %s24, 0
    %p317 = por %p315, %p316
    %p318 = scmp.ne.s32.totalorder %s310, %s312
    %p319 = scmp.eq.s32.totalorder %s29, 1
    %p320 = por %p318, %p319
    %p321 = scmp.ne.s32.totalorder %s312, %s313
    %p322 = scmp.eq.s32.totalorder %s29, 0
    %p323 = por %p321, %p322
    %p324 = scmp.ne.s32.totalorder %s312, %s313
    %p325 = scmp.eq.s32.totalorder %s30, 1
    %p326 = por %p324, %p325
    %p328 = scmp.ne.s32.totalorder %s313, %s327
    %p329 = scmp.eq.s32.totalorder %s30, 0
    %p330 = por %p328, %p329
    %s331 = ssub.s32 %s24, %s31
    %p332 = scmp.eq.s32.totalorder %s331, 0
    %s334 = sadd.s32 %s333, 1
    %s335 = scalar_select %p332, %s333, %s334
    %p338 = pneg %p332
    %p339 = scmp.eq.s32.totalorder %s24, 1
    %p340 = por %p338, %p339
    %p341 = scmp.ne.s32.totalorder %s333, %s336
    %p342 = scmp.eq.s32.totalorder %s24, 0
    %p343 = por %p341, %p342
    %p344 = scmp.ne.s32.totalorder %s333, %s336
    %p345 = scmp.eq.s32.totalorder %s29, 1
    %p346 = por %p344, %p345
    %p347 = scmp.ne.s32.totalorder %s336, %s337
    %p348 = scmp.eq.s32.totalorder %s29, 0
    %p349 = por %p347, %p348
    %p350 = scmp.ne.s32.totalorder %s336, %s337
    %p351 = scmp.eq.s32.totalorder %s30, 1
    %p352 = por %p350, %p351
    %p354 = scmp.ne.s32.totalorder %s337, %s353
    %p355 = scmp.eq.s32.totalorder %s30, 0
    %p356 = por %p354, %p355
    %s357 = ssub.s32 %s24, %s31
    %p358 = scmp.eq.s32.totalorder %s357, 0
    %s360 = sadd.s32 %s359, 1
    %s361 = scalar_select %p358, %s359, %s360
    %p364 = pneg %p358
    %p365 = scmp.eq.s32.totalorder %s24, 1
    %p366 = por %p364, %p365
    %p367 = scmp.ne.s32.totalorder %s359, %s362
    %p368 = scmp.eq.s32.totalorder %s24, 0
    %p369 = por %p367, %p368
    %p370 = scmp.ne.s32.totalorder %s359, %s362
    %p371 = scmp.eq.s32.totalorder %s29, 1
    %p372 = por %p370, %p371
    %p373 = scmp.ne.s32.totalorder %s362, %s363
    %p374 = scmp.eq.s32.totalorder %s29, 0
    %p375 = por %p373, %p374
    %p376 = scmp.ne.s32.totalorder %s362, %s363
    %p377 = scmp.eq.s32.totalorder %s30, 1
    %p378 = por %p376, %p377
    %p380 = scmp.ne.s32.totalorder %s363, %s379
    %p381 = scmp.eq.s32.totalorder %s30, 0
    %p382 = por %p380, %p381
    %p383 = scmp.le.s32.totalorder 1, %s24
    %p384 = scmp.lt.s32.totalorder %s24, 3
    %p385 = pnand %p383, %p384
    %p386 = pneg %p385
    // Predicated region
    $region9: #{scorrnet_forward.1} parent=5 // pred_check
      _
    $region10: #{scorrnet_forward.1} parent=5 // pred_check_branch
      %388 = sbr.rel (%p385) target = $region12
    $region11: #{scorrnet_forward.1} parent=5 // pred_region
      %s389 = ssub.s32 %s24, 1
      // Predicated region
      $region13: #{scorrnet_forward.1} parent=11 // pred_check
        %p390 = pneg %p71
      $region14: #{scorrnet_forward.1} parent=11 // pred_check_branch
        %392 = sbr.rel (%p390) target = $region16
      $region15: #{scorrnet_forward.1} parent=11 // pred_region
        _
      $region16: #{scorrnet_forward.1} parent=11 // pred_fallthru
        _
      // Predicated region
      $region17: #{scorrnet_forward.1} parent=11 // pred_check
        %p393 = pneg %p92
      $region18: #{scorrnet_forward.1} parent=11 // pred_check_branch
        %395 = sbr.rel (%p393) target = $region20
      $region19: #{scorrnet_forward.1} parent=11 // pred_region
        _
      $region20: #{scorrnet_forward.1} parent=11 // pred_fallthru
        _
      // Predicated region
      $region21: #{scorrnet_forward.1} parent=11 // pred_check
        %p396 = pneg %p113
      $region22: #{scorrnet_forward.1} parent=11 // pred_check_branch
        %398 = sbr.rel (%p396) target = $region24
      $region23: #{scorrnet_forward.1} parent=11 // pred_region
        _
      $region24: #{scorrnet_forward.1} parent=11 // pred_fallthru
        _
      // Predicated region
      $region25: #{scorrnet_forward.1} parent=11 // pred_check
        %p399 = pneg %p134
      $region26: #{scorrnet_forward.1} parent=11 // pred_check_branch
        %401 = sbr.rel (%p399) target = $region28
      $region27: #{scorrnet_forward.1} parent=11 // pred_region
        _
      $region28: #{scorrnet_forward.1} parent=11 // pred_fallthru
        _
      // Predicated region
      $region29: #{scorrnet_forward.1} parent=11 // pred_check
        %p402 = pneg %p155
      $region30: #{scorrnet_forward.1} parent=11 // pred_check_branch
        %404 = sbr.rel (%p402) target = $region32
      $region31: #{scorrnet_forward.1} parent=11 // pred_region
        _
      $region32: #{scorrnet_forward.1} parent=11 // pred_fallthru
        _
      // Predicated region
      $region33: #{scorrnet_forward.1} parent=11 // pred_check
        %p405 = pneg %p176
      $region34: #{scorrnet_forward.1} parent=11 // pred_check_branch
        %407 = sbr.rel (%p405) target = $region36
      $region35: #{scorrnet_forward.1} parent=11 // pred_region
        _
      $region36: #{scorrnet_forward.1} parent=11 // pred_fallthru
        _
      // Predicated region
      $region37: #{scorrnet_forward.1} parent=11 // pred_check
        %p408 = pneg %p197
      $region38: #{scorrnet_forward.1} parent=11 // pred_check_branch
        %410 = sbr.rel (%p408) target = $region40
      $region39: #{scorrnet_forward.1} parent=11 // pred_region
        _
      $region40: #{scorrnet_forward.1} parent=11 // pred_fallthru
        _
      // Predicated region
      $region41: #{scorrnet_forward.1} parent=11 // pred_check
        %p411 = pneg %p218
      $region42: #{scorrnet_forward.1} parent=11 // pred_check_branch
        %413 = sbr.rel (%p411) target = $region44
      $region43: #{scorrnet_forward.1} parent=11 // pred_region
        _
      $region44: #{scorrnet_forward.1} parent=11 // pred_fallthru
        _
      // Predicated region
      $region45: #{scorrnet_forward.1} parent=11 // pred_check
        %p414 = pneg %p239
      $region46: #{scorrnet_forward.1} parent=11 // pred_check_branch
        %416 = sbr.rel (%p414) target = $region48
      $region47: #{scorrnet_forward.1} parent=11 // pred_region
        _
      $region48: #{scorrnet_forward.1} parent=11 // pred_fallthru
        _
      // Predicated region
      $region49: #{scorrnet_forward.1} parent=11 // pred_check
        %p417 = pneg %p260
      $region50: #{scorrnet_forward.1} parent=11 // pred_check_branch
        %419 = sbr.rel (%p417) target = $region52
      $region51: #{scorrnet_forward.1} parent=11 // pred_region
        _
      $region52: #{scorrnet_forward.1} parent=11 // pred_fallthru
        _
      // Predicated region
      $region53: #{scorrnet_forward.1} parent=11 // pred_check
        %p420 = pneg %p281
      $region54: #{scorrnet_forward.1} parent=11 // pred_check_branch
        %422 = sbr.rel (%p420) target = $region56
      $region55: #{scorrnet_forward.1} parent=11 // pred_region
        _
      $region56: #{scorrnet_forward.1} parent=11 // pred_fallthru
        _
      // Predicated region
      $region57: #{scorrnet_forward.1} parent=11 // pred_check
        %p423 = pneg %p302
      $region58: #{scorrnet_forward.1} parent=11 // pred_check_branch
        %425 = sbr.rel (%p423) target = $region60
      $region59: #{scorrnet_forward.1} parent=11 // pred_region
        _
      $region60: #{scorrnet_forward.1} parent=11 // pred_fallthru
        _
      // Predicated region
      $region61: #{scorrnet_forward.1} parent=11 // pred_check
        %p426 = pneg %p323
      $region62: #{scorrnet_forward.1} parent=11 // pred_check_branch
        %428 = sbr.rel (%p426) target = $region64
      $region63: #{scorrnet_forward.1} parent=11 // pred_region
        _
      $region64: #{scorrnet_forward.1} parent=11 // pred_fallthru
        _
    $region12: #{scorrnet_forward.1} parent=5 // pred_fallthru
      _
    %p429 = scmp.lt.s32.totalorder %s24, 2
    // Predicated region
    $region65: #{scorrnet_forward.1} parent=5 // pred_check
      %p430 = pneg %p429
    $region66: #{scorrnet_forward.1} parent=5 // pred_check_branch
      %432 = sbr.rel (%p430) target = $region68
    $region67: #{scorrnet_forward.1} parent=5 // pred_region
      // Predicated region
      $region69: #{scorrnet_forward.1} parent=67 // pred_check
        %p433 = pneg %p44
      $region70: #{scorrnet_forward.1} parent=67 // pred_check_branch
        %435 = sbr.rel (%p433) target = $region72
      $region71: #{scorrnet_forward.1} parent=67 // pred_region
        %s436 = smul.u32 2, %s24
        %p437 = scmp.lt.s32.totalorder %s436, 3
        %s438 = scalar_select %p437, %s436, 3
        %s439 = smul.addr %s438, 4
        %s440 = scalar_lea.vmem %s0, %s439
        %s441 = smul.u32 2, %s24
      $region72: #{scorrnet_forward.1} parent=67 // pred_fallthru
        _
    $region68: #{scorrnet_forward.1} parent=5 // pred_fallthru
      _
    %p442 = scmp.le.s32.totalorder 1, %s24
    %p443 = scmp.lt.s32.totalorder %s24, 3
    %p444 = pnand %p442, %p443
    %p445 = pneg %p444
    // Predicated region
    $region73: #{scorrnet_forward.1} parent=5 // pred_check
      _
    $region74: #{scorrnet_forward.1} parent=5 // pred_check_branch
      %447 = sbr.rel (%p444) target = $region76
    $region75: #{scorrnet_forward.1} parent=5 // pred_region
      %s448 = ssub.s32 %s24, 1
      %s449 = smul.u32 2, %s29
      %p450 = scmp.lt.s32.totalorder %s449, 3
      %s451 = scalar_select %p450, %s449, 3
      %s452 = smul.addr %s451, 4
      %s453 = scalar_lea.vmem %s0, %s452
      %p454 = pneg %p50
      %p455 = pneg %p47
      %p456 = pneg %p71
      %p457 = pneg %p68
      %p458 = pneg %p92
      %p459 = pneg %p89
      %p460 = pneg %p113
      %p461 = pneg %p110
      %p462 = pneg %p134
      %p463 = pneg %p131
      %p464 = pneg %p155
      %p465 = pneg %p152
      %p466 = pneg %p176
      %p467 = pneg %p173
      %p468 = pneg %p197
      %p469 = pneg %p194
      %p470 = pneg %p218
      %p471 = pneg %p215
      %p472 = pneg %p239
      %p473 = pneg %p236
      %p474 = pneg %p260
      %p475 = pneg %p257
      %p476 = pneg %p281
      %p477 = pneg %p278
      %p478 = pneg %p302
      %p479 = pneg %p299
      %p480 = pneg %p323
      %p481 = pneg %p320
      %p482 = pneg %p349
      %p483 = pneg %p346
      %s484 = smul.u32 2, %s29
      %p485 = scmp.lt.s32.totalorder %s484, 3
      %s486 = scalar_select %p485, %s484, 3
      %s487 = smul.addr %s486, 2
      %s488 = scalar_lea.vmem %s14, %s487
      %p489 = pneg %p375
      %p490 = pneg %p372
      %s491 = smul.u32 2, %s29
      %p492 = scmp.lt.s32.totalorder %s491, 3
      %s493 = scalar_select %p492, %s491, 3
      %s494 = scalar_lea.vmem %s15, %s493
      %s495 = smul.u32 2, %s29
      %p496 = scmp.lt.s32.totalorder %s495, 3
      %s497 = scalar_select %p496, %s495, 3
      %s498 = smul.addr %s497, 4
      %s499 = scalar_lea.vmem %s0, %s498
      %s500 = smul.u32 2, %s29
      %s501 = smul.u32 2, %s29
      %p502 = scmp.lt.s32.totalorder %s501, 3
      %s503 = scalar_select %p502, %s501, 3
      %s504 = smul.addr %s503, 2
      %s505 = scalar_lea.vmem %s14, %s504
      %s506 = smul.u32 2, %s29
      %s507 = smul.u32 2, %s29
      %p508 = scmp.lt.s32.totalorder %s507, 3
      %s509 = scalar_select %p508, %s507, 3
      %s510 = scalar_lea.vmem %s15, %s509
      %s511 = smul.u32 2, %s29
      %v512 = vld [vmem:[%s499] sm:$0xff]
      %v514 = vperm.slane %v512, 0
      %v515 = vperm.slane %v512, 4
      %518 = vrot.lane.b32.xlu0 %v514, 17
      %v519 = vpop.permute.xlu0 %518
      %520 = vrot.lane.b32.xlu0 %v515, 17
      %v521 = vpop.permute.xlu0 %520
      %v522 = vlaneseq
      %v523 = vand.u32 %v522, 127
      %vm524 = vcmp.lt.s32.totalorder %v523, 17
      %v525 = vsel %vm524, %v519, %v521
      %v526 = vsel %vm524, %v521, %v519
      %v527 = vld [vmem:[%s1] ss:$8 sm:$0x3]
      %v529 = vperm.slane %v527, 0
      %v530 = vperm.slane %v527, 1
      %v533 = vmul.f32 %v526, %v529
      %v534 = vmul.f32 %v525, %v530
      %535 = vrot.lane.b32.xlu0 %v514, 16
      %v536 = vpop.permute.xlu0 %535
      %537 = vrot.lane.b32.xlu0 %v515, 16
      %v538 = vpop.permute.xlu0 %537
      %vm539 = vcmp.lt.s32.totalorder %v523, 16
      %v540 = vsel %vm539, %v536, %v538
      %v541 = vsel %vm539, %v538, %v536
      %s542 = scalar_lea.vmem %s1, 1
      %v543 = vld [vmem:[%s542] ss:$8 sm:$0x3]
      %v545 = vperm.slane %v543, 0
      %v546 = vperm.slane %v543, 1
      %v549 = vmul.f32 %v541, %v545
      %v550 = vmul.f32 %v540, %v546
      %551 = vrot.lane.b32.xlu0 %v514, 15
      %v552 = vpop.permute.xlu0 %551
      %553 = vrot.lane.b32.xlu0 %v515, 15
      %v554 = vpop.permute.xlu0 %553
      %vm555 = vcmp.lt.s32.totalorder %v523, 15
      %v556 = vsel %vm555, %v552, %v554
      %v557 = vsel %vm555, %v554, %v552
      %s558 = scalar_lea.vmem %s1, 2
      %v559 = vld [vmem:[%s558] ss:$8 sm:$0x3]
      %v561 = vperm.slane %v559, 0
      %v562 = vperm.slane %v559, 1
      %v565 = vmul.f32 %v557, %v561
      %v566 = vmul.f32 %v556, %v562
      %567 = vrot.lane.b32.xlu0 %v514, 1
      %v568 = vpop.permute.xlu0 %567
      %569 = vrot.lane.b32.xlu0 %v515, 1
      %v570 = vpop.permute.xlu0 %569
      %vm571 = vcmp.lt.s32.totalorder %v523, 1
      %v572 = vsel %vm571, %v568, %v570
      %v573 = vsel %vm571, %v570, %v568
      %s574 = scalar_lea.vmem %s1, 3
      %v575 = vld [vmem:[%s574] ss:$8 sm:$0x3]
      %v577 = vperm.slane %v575, 0
      %v578 = vperm.slane %v575, 1
      %v581 = vmul.f32 %v573, %v577
      %v582 = vmul.f32 %v572, %v578
      %583 = vrot.lane.b32.xlu0 %v514, 127
      %v584 = vpop.permute.xlu0 %583
      %585 = vrot.lane.b32.xlu0 %v515, 127
      %v586 = vpop.permute.xlu0 %585
      %vm587 = vcmp.lt.s32.totalorder %v523, 127
      %v588 = vsel %vm587, %v584, %v586
      %v589 = vsel %vm587, %v586, %v584
      %s590 = scalar_lea.vmem %s1, 5
      %v591 = vld [vmem:[%s590] ss:$8 sm:$0x3]
      %v593 = vperm.slane %v591, 0
      %v594 = vperm.slane %v591, 1
      %v597 = vmul.f32 %v588, %v593
      %v598 = vmul.f32 %v589, %v594
      %599 = vrot.lane.b32.xlu0 %v514, 113
      %v600 = vpop.permute.xlu0 %599
      %601 = vrot.lane.b32.xlu0 %v515, 113
      %v602 = vpop.permute.xlu0 %601
      %vm603 = vcmp.lt.s32.totalorder %v523, 113
      %v604 = vsel %vm603, %v600, %v602
      %v605 = vsel %vm603, %v602, %v600
      %s606 = scalar_lea.vmem %s1, 6
      %v607 = vld [vmem:[%s606] ss:$8 sm:$0x3]
      %v609 = vperm.slane %v607, 0
      %v610 = vperm.slane %v607, 1
      %v613 = vmul.f32 %v604, %v609
      %v614 = vmul.f32 %v605, %v610
      %615 = vrot.lane.b32.xlu0 %v514, 112
      %v616 = vpop.permute.xlu0 %615
      %617 = vrot.lane.b32.xlu0 %v515, 112
      %v618 = vpop.permute.xlu0 %617
      %vm619 = vcmp.lt.s32.totalorder %v523, 112
      %v620 = vsel %vm619, %v616, %v618
      %v621 = vsel %vm619, %v618, %v616
      %s622 = scalar_lea.vmem %s1, 7
      %v623 = vld [vmem:[%s622] ss:$8 sm:$0x3]
      %v625 = vperm.slane %v623, 0
      %v626 = vperm.slane %v623, 1
      %v629 = vmul.f32 %v620, %v625
      %v630 = vmul.f32 %v621, %v626
      %631 = vrot.lane.b32.xlu0 %v514, 111
      %v632 = vpop.permute.xlu0 %631
      %633 = vrot.lane.b32.xlu0 %v515, 111
      %v634 = vpop.permute.xlu0 %633
      %vm635 = vcmp.lt.s32.totalorder %v523, 111
      %v636 = vsel %vm635, %v632, %v634
      %v637 = vsel %vm635, %v634, %v632
      %s638 = scalar_lea.vmem %s1, 16
      %v639 = vld [vmem:[%s638] ss:$8 sm:$0x3]
      %v641 = vperm.slane %v639, 0
      %v642 = vperm.slane %v639, 1
      %v645 = vmul.f32 %v636, %v641
      %v646 = vmul.f32 %v637, %v642
      %v649 = vrot.slane %v549, 7
      %v650 = vrot.slane %v550, 7
      %v655 = vrot.slane %v565, 6
      %v656 = vrot.slane %v566, 6
      %v661 = vrot.slane %v581, 5
      %v662 = vrot.slane %v582, 5
      %v667 = vrot.slane %v597, 3
      %v668 = vrot.slane %v598, 3
      %v673 = vrot.slane %v613, 2
      %v674 = vrot.slane %v614, 2
      %v679 = vrot.slane %v629, 1
      %v680 = vrot.slane %v630, 1
      %vm683 = vcmask 1040384
      %v684 = vsel %vm683, %v533, %v649
      %v685 = vsel %vm683, %v534, %v650
      %vm686 = vcmask 1041408
      %v687 = vsel %vm686, %v684, %v655
      %v688 = vsel %vm686, %v685, %v656
      %vm689 = vcmask 1042432
      %v690 = vsel %vm689, %v687, %v661
      %v691 = vsel %vm689, %v688, %v662
      %vm692 = vcmask 1043456
      %v693 = vsel %vm692, %v690, %v514
      %v694 = vsel %vm692, %v691, %v515
      %vm695 = vcmask 1044480
      %v696 = vsel %vm695, %v693, %v667
      %v697 = vsel %vm695, %v694, %v668
      %vm698 = vcmask 1045504
      %v699 = vsel %vm698, %v696, %v673
      %v700 = vsel %vm698, %v697, %v674
      %vm701 = vcmask 1046528
      %v702 = vsel %vm701, %v699, %v679
      %v703 = vsel %vm701, %v700, %v680
      %v704 = vld [vmem:[%s2] sm:$0xff]
      %v705 = vld [vmem:[%s3] sm:$0xff]
      %707 = vset.pattern.permute.xlu0 0
      %708 = vperm.xlu0 %707, %v705
      %v709 = vpop.permute.xlu0 %708
      %vm711 = vcmask 72704
      %v713 = vsel %vm711, %v704, 0
      %v716 = vsel %vm683, %v645, 0
      %v719 = vsel %vm683, %v646, 0
      %721 = vmatpush.msra.mxu0 0.0
      %722 = vmatpush.msra.mxu0 0.0
      %723 = vmatpush.msra.mxu0 0.0
      %724 = vmatpush.msra.mxu0 0.0
      %725 = vmatpush.msra.mxu0 0.0
      %726 = vmatpush.msra.mxu0 0.0
      %727 = vmatpush.msra.mxu0 0.0
      %728 = vmatpush.msra.mxu0 0.0
      %729 = vmatpush.msra.mxu0 0.0
      %730 = vmatpush.msra.mxu0 0.0
      %731 = vmatpush.msra.mxu0 0.0
      %732 = vmatpush.msra.mxu0 0.0
      %733 = vmatpush.msra.mxu0 0.0
      %734 = vmatpush.msra.mxu0 0.0
      %735 = vmatpush.msra.mxu0 %v716
      %736 = vmatpush.msra.mxu0 %v702
      %737 = vmatmul.f32.gmra.mxu0 %v713
      %v738 = vpop.f32.mrf.mxu0
      %v739 = vadd.f32 %v709, %v738
      %740 = vdwg.mxu0
      %741 = vmatpush.msra.mxu0 0.0
      %742 = vmatpush.msra.mxu0 0.0
      %743 = vmatpush.msra.mxu0 0.0
      %744 = vmatpush.msra.mxu0 0.0
      %745 = vmatpush.msra.mxu0 0.0
      %746 = vmatpush.msra.mxu0 0.0
      %747 = vmatpush.msra.mxu0 0.0
      %748 = vmatpush.msra.mxu0 0.0
      %749 = vmatpush.msra.mxu0 0.0
      %750 = vmatpush.msra.mxu0 0.0
      %751 = vmatpush.msra.mxu0 0.0
      %752 = vmatpush.msra.mxu0 0.0
      %753 = vmatpush.msra.mxu0 0.0
      %754 = vmatpush.msra.mxu0 0.0
      %755 = vmatpush.msra.mxu0 %v719
      %756 = vmatpush.msra.mxu0 %v703
      %757 = vmatmul.f32.gmra.mxu0 %v713
      %v758 = vpop.f32.mrf.mxu0
      %v759 = vadd.f32 %v709, %v758
      %760 = vdwg.mxu0
      %v761 = vmax.f32 %v739, 0.0
      %v762 = vmax.f32 %v759, 0.0
      %763 = vrot.lane.b32.xlu0 %v761, 17
      %v764 = vpop.permute.xlu0 %763
      %765 = vrot.lane.b32.xlu0 %v762, 17
      %v766 = vpop.permute.xlu0 %765
      %v767 = vsel %vm524, %v764, %v766
      %v768 = vsel %vm524, %v766, %v764
      %v769 = vmul.f32 %v768, %v529
      %v770 = vmul.f32 %v767, %v530
      %771 = vrot.lane.b32.xlu0 %v761, 16
      %v772 = vpop.permute.xlu0 %771
      %773 = vrot.lane.b32.xlu0 %v762, 16
      %v774 = vpop.permute.xlu0 %773
      %v775 = vsel %vm539, %v772, %v774
      %v776 = vsel %vm539, %v774, %v772
      %v777 = vmul.f32 %v776, %v545
      %v778 = vmul.f32 %v775, %v546
      %779 = vrot.lane.b32.xlu0 %v761, 15
      %v780 = vpop.permute.xlu0 %779
      %781 = vrot.lane.b32.xlu0 %v762, 15
      %v782 = vpop.permute.xlu0 %781
      %v783 = vsel %vm555, %v780, %v782
      %v784 = vsel %vm555, %v782, %v780
      %v785 = vmul.f32 %v784, %v561
      %v786 = vmul.f32 %v783, %v562
      %787 = vrot.lane.b32.xlu0 %v761, 1
      %v788 = vpop.permute.xlu0 %787
      %789 = vrot.lane.b32.xlu0 %v762, 1
      %v790 = vpop.permute.xlu0 %789
      %v791 = vsel %vm571, %v788, %v790
      %v792 = vsel %vm571, %v790, %v788
      %v793 = vmul.f32 %v792, %v577
      %v794 = vmul.f32 %v791, %v578
      %795 = vrot.lane.b32.xlu0 %v761, 127
      %v796 = vpop.permute.xlu0 %795
      %797 = vrot.lane.b32.xlu0 %v762, 127
      %v798 = vpop.permute.xlu0 %797
      %v799 = vsel %vm587, %v796, %v798
      %v800 = vsel %vm587, %v798, %v796
      %v801 = vmul.f32 %v799, %v593
      %v802 = vmul.f32 %v800, %v594
      %803 = vrot.lane.b32.xlu0 %v761, 113
      %v804 = vpop.permute.xlu0 %803
      %805 = vrot.lane.b32.xlu0 %v762, 113
      %v806 = vpop.permute.xlu0 %805
      %v807 = vsel %vm603, %v804, %v806
      %v808 = vsel %vm603, %v806, %v804
      %v809 = vmul.f32 %v807, %v609
      %v810 = vmul.f32 %v808, %v610
      %811 = vrot.lane.b32.xlu0 %v761, 112
      %v812 = vpop.permute.xlu0 %811
      %813 = vrot.lane.b32.xlu0 %v762, 112
      %v814 = vpop.permute.xlu0 %813
      %v815 = vsel %vm619, %v812, %v814
      %v816 = vsel %vm619, %v814, %v812
      %v817 = vmul.f32 %v815, %v625
      %v818 = vmul.f32 %v816, %v626
      %819 = vrot.lane.b32.xlu0 %v761, 111
      %v820 = vpop.permute.xlu0 %819
      %821 = vrot.lane.b32.xlu0 %v762, 111
      %v822 = vpop.permute.xlu0 %821
      %v823 = vsel %vm635, %v820, %v822
      %v824 = vsel %vm635, %v822, %v820
      %v825 = vmul.f32 %v823, %v641
      %v826 = vmul.f32 %v824, %v642
      %v827 = vld [vmem:[%s4] sm:$0xff]
      %v828 = vld [vmem:[%s5] sm:$0xff]
      %830 = vset.pattern.permute.xlu0 0
      %831 = vperm.xlu0 %830, %v828
      %v832 = vpop.permute.xlu0 %831
      %vm834 = vcmask 588800
      %v836 = vsel %vm834, %v827, 0
      %838 = vmatpush.msra.mxu0 0.0
      %839 = vmatpush.msra.mxu0 0.0
      %840 = vmatpush.msra.mxu0 0.0
      %841 = vmatpush.msra.mxu0 0.0
      %842 = vmatpush.msra.mxu0 0.0
      %843 = vmatpush.msra.mxu0 0.0
      %844 = vmatpush.msra.mxu0 0.0
      %845 = vmatpush.msra.mxu0 %v825
      %846 = vmatpush.msra.mxu0 %v817
      %847 = vmatpush.msra.mxu0 %v809
      %848 = vmatpush.msra.mxu0 %v801
      %849 = vmatpush.msra.mxu0 %v761
      %850 = vmatpush.msra.mxu0 %v793
      %851 = vmatpush.msra.mxu0 %v785
      %852 = vmatpush.msra.mxu0 %v777
      %853 = vmatpush.msra.mxu0 %v769
      %854 = vmatmul.f32.gmra.mxu0 %v836
      %v855 = vpop.f32.mrf.mxu0
      %v856 = vadd.f32 %v832, %v855
      %857 = vdwg.mxu0
      %858 = vmatpush.msra.mxu0 0.0
      %859 = vmatpush.msra.mxu0 0.0
      %860 = vmatpush.msra.mxu0 0.0
      %861 = vmatpush.msra.mxu0 0.0
      %862 = vmatpush.msra.mxu0 0.0
      %863 = vmatpush.msra.mxu0 0.0
      %864 = vmatpush.msra.mxu0 0.0
      %865 = vmatpush.msra.mxu0 %v826
      %866 = vmatpush.msra.mxu0 %v818
      %867 = vmatpush.msra.mxu0 %v810
      %868 = vmatpush.msra.mxu0 %v802
      %869 = vmatpush.msra.mxu0 %v762
      %870 = vmatpush.msra.mxu0 %v794
      %871 = vmatpush.msra.mxu0 %v786
      %872 = vmatpush.msra.mxu0 %v778
      %873 = vmatpush.msra.mxu0 %v770
      %874 = vmatmul.f32.gmra.mxu0 %v836
      %v875 = vpop.f32.mrf.mxu0
      %v876 = vadd.f32 %v832, %v875
      %877 = vdwg.mxu0
      %v878 = vmax.f32 %v856, 0.0
      %v879 = vmax.f32 %v876, 0.0
      %v880 = vld [vmem:[%s6] sm:$0x3]
      %v881 = vld [vmem:[%s7] sm:$0x3]
      %883 = vset.pattern.permute.xlu0 0
      %884 = vperm.xlu0 %883, %v881
      %v885 = vpop.permute.xlu0 %884
      %vm887 = vcmask 64512
      %v889 = vsel %vm887, %v880, 0
      %891 = vmatpush.msra.mxu0 0.0
      %892 = vmatpush.msra.mxu0 0.0
      %893 = vmatpush.msra.mxu0 0.0
      %894 = vmatpush.msra.mxu0 0.0
      %895 = vmatpush.msra.mxu0 0.0
      %896 = vmatpush.msra.mxu0 0.0
      %897 = vmatpush.msra.mxu0 0.0
      %898 = vmatpush.msra.mxu0 0.0
      %899 = vmatpush.msra.mxu0 0.0
      %900 = vmatpush.msra.mxu0 0.0
      %901 = vmatpush.msra.mxu0 0.0
      %902 = vmatpush.msra.mxu0 0.0
      %903 = vmatpush.msra.mxu0 0.0
      %904 = vmatpush.msra.mxu0 0.0
      %905 = vmatpush.msra.mxu0 0.0
      %906 = vmatpush.msra.mxu0 %v878
      %907 = vmatmul.f32.gmra.mxu0 %v889
      %v908 = vpop.f32.mrf.mxu0
      %v909 = vadd.f32 %v885, %v908
      %910 = vdwg.mxu0
      %911 = vmatpush.msra.mxu0 0.0
      %912 = vmatpush.msra.mxu0 0.0
      %913 = vmatpush.msra.mxu0 0.0
      %914 = vmatpush.msra.mxu0 0.0
      %915 = vmatpush.msra.mxu0 0.0
      %916 = vmatpush.msra.mxu0 0.0
      %917 = vmatpush.msra.mxu0 0.0
      %918 = vmatpush.msra.mxu0 0.0
      %919 = vmatpush.msra.mxu0 0.0
      %920 = vmatpush.msra.mxu0 0.0
      %921 = vmatpush.msra.mxu0 0.0
      %922 = vmatpush.msra.mxu0 0.0
      %923 = vmatpush.msra.mxu0 0.0
      %924 = vmatpush.msra.mxu0 0.0
      %925 = vmatpush.msra.mxu0 0.0
      %926 = vmatpush.msra.mxu0 %v879
      %927 = vmatmul.f32.gmra.mxu0 %v889
      %v928 = vpop.f32.mrf.mxu0
      %v929 = vadd.f32 %v885, %v928
      %930 = vdwg.mxu0
      %v933 = vrot.slane %v929, 6
      %v934 = vsel %vm686, %v909, %v933
      %936 = vst [vmem:[%s505] sm:$0xf] %v934
      %v937 = vrot.slane %v909, 7
      %v938 = vrot.slane %v929, 7
      %vm941 = vcmp.gt.f32.partialorder %v909, %v937
      %vm942 = vcmp.gt.f32.partialorder %v929, %v938
      %v943 = vsel %vm941, 1.0, 0.0
      %v944 = vsel %vm942, 1.0, 0.0
      %945 = vst [vmem:[#allocation1] ss:$2 sm:$0xff] %v512
      %v946 = vld.sshfl [vmem:[#allocation1] sm:$0xff pattern:$0x75316420]
      %v947 = vld.sshfl [vmem:[#allocation1 + $0x8] sm:$0xff pattern:$0x75316420]
      %v952 = vrot.slane %v943, 5
      %v953 = vrot.slane %v944, 5
      %v956 = vsel %vm692, %v946, %v952
      %v957 = vsel %vm692, %v947, %v953
      %958 = vrot.lane.b32.xlu0 %v956, 17
      %v959 = vpop.permute.xlu0 %958
      %960 = vrot.lane.b32.xlu0 %v957, 17
      %v961 = vpop.permute.xlu0 %960
      %v962 = vsel %vm524, %v959, %v961
      %v963 = vsel %vm524, %v961, %v959
      %v964 = vld [vmem:[%s1] ss:$8 sm:$0x3]
      %v966 = vperm.slane %v964, 0
      %v967 = vperm.slane %v964, 1
      %v970 = vmul.f32 %v963, %v966
      %v971 = vmul.f32 %v962, %v967
      %972 = vrot.lane.b32.xlu0 %v956, 16
      %v973 = vpop.permute.xlu0 %972
      %974 = vrot.lane.b32.xlu0 %v957, 16
      %v975 = vpop.permute.xlu0 %974
      %v976 = vsel %vm539, %v973, %v975
      %v977 = vsel %vm539, %v975, %v973
      %v978 = vld [vmem:[%s542] ss:$8 sm:$0x3]
      %v980 = vperm.slane %v978, 0
      %v981 = vperm.slane %v978, 1
      %v984 = vmul.f32 %v977, %v980
      %v985 = vmul.f32 %v976, %v981
      %986 = vrot.lane.b32.xlu0 %v956, 15
      %v987 = vpop.permute.xlu0 %986
      %988 = vrot.lane.b32.xlu0 %v957, 15
      %v989 = vpop.permute.xlu0 %988
      %v990 = vsel %vm555, %v987, %v989
      %v991 = vsel %vm555, %v989, %v987
      %v992 = vld [vmem:[%s558] ss:$8 sm:$0x3]
      %v994 = vperm.slane %v992, 0
      %v995 = vperm.slane %v992, 1
      %v998 = vmul.f32 %v991, %v994
      %v999 = vmul.f32 %v990, %v995
      %1000 = vrot.lane.b32.xlu0 %v956, 1
      %v1001 = vpop.permute.xlu0 %1000
      %1002 = vrot.lane.b32.xlu0 %v957, 1
      %v1003 = vpop.permute.xlu0 %1002
      %v1004 = vsel %vm571, %v1001, %v1003
      %v1005 = vsel %vm571, %v1003, %v1001
      %v1006 = vld [vmem:[%s574] ss:$8 sm:$0x3]
      %v1008 = vperm.slane %v1006, 0
      %v1009 = vperm.slane %v1006, 1
      %v1012 = vmul.f32 %v1005, %v1008
      %v1013 = vmul.f32 %v1004, %v1009
      %1014 = vrot.lane.b32.xlu0 %v956, 127
      %v1015 = vpop.permute.xlu0 %1014
      %1016 = vrot.lane.b32.xlu0 %v957, 127
      %v1017 = vpop.permute.xlu0 %1016
      %v1018 = vsel %vm587, %v1015, %v1017
      %v1019 = vsel %vm587, %v1017, %v1015
      %v1020 = vld [vmem:[%s590] ss:$8 sm:$0x3]
      %v1022 = vperm.slane %v1020, 0
      %v1023 = vperm.slane %v1020, 1
      %v1026 = vmul.f32 %v1018, %v1022
      %v1027 = vmul.f32 %v1019, %v1023
      %1028 = vrot.lane.b32.xlu0 %v956, 113
      %v1029 = vpop.permute.xlu0 %1028
      %1030 = vrot.lane.b32.xlu0 %v957, 113
      %v1031 = vpop.permute.xlu0 %1030
      %v1032 = vsel %vm603, %v1029, %v1031
      %v1033 = vsel %vm603, %v1031, %v1029
      %v1034 = vld [vmem:[%s606] ss:$8 sm:$0x3]
      %v1036 = vperm.slane %v1034, 0
      %v1037 = vperm.slane %v1034, 1
      %v1040 = vmul.f32 %v1032, %v1036
      %v1041 = vmul.f32 %v1033, %v1037
      %1042 = vrot.lane.b32.xlu0 %v956, 112
      %v1043 = vpop.permute.xlu0 %1042
      %1044 = vrot.lane.b32.xlu0 %v957, 112
      %v1045 = vpop.permute.xlu0 %1044
      %v1046 = vsel %vm619, %v1043, %v1045
      %v1047 = vsel %vm619, %v1045, %v1043
      %v1048 = vld [vmem:[%s622] ss:$8 sm:$0x3]
      %v1050 = vperm.slane %v1048, 0
      %v1051 = vperm.slane %v1048, 1
      %v1054 = vmul.f32 %v1046, %v1050
      %v1055 = vmul.f32 %v1047, %v1051
      %1056 = vrot.lane.b32.xlu0 %v956, 111
      %v1057 = vpop.permute.xlu0 %1056
      %1058 = vrot.lane.b32.xlu0 %v957, 111
      %v1059 = vpop.permute.xlu0 %1058
      %v1060 = vsel %vm635, %v1057, %v1059
      %v1061 = vsel %vm635, %v1059, %v1057
      %v1062 = vld [vmem:[%s638] ss:$8 sm:$0x3]
      %v1064 = vperm.slane %v1062, 0
      %v1065 = vperm.slane %v1062, 1
      %v1068 = vmul.f32 %v1060, %v1064
      %v1069 = vmul.f32 %v1061, %v1065
      %v1072 = vrot.slane %v984, 3
      %v1073 = vrot.slane %v985, 3
      %v1078 = vrot.slane %v998, 6
      %v1079 = vrot.slane %v999, 6
      %v1084 = vrot.slane %v1012, 1
      %v1085 = vrot.slane %v1013, 1
      %v1090 = vrot.slane %v956, 4
      %v1091 = vrot.slane %v957, 4
      %v1096 = vrot.slane %v1026, 7
      %v1097 = vrot.slane %v1027, 7
      %v1102 = vrot.slane %v1040, 2
      %v1103 = vrot.slane %v1041, 2
      %v1108 = vrot.slane %v1054, 5
      %v1109 = vrot.slane %v1055, 5
      %v1112 = vsel %vm695, %v970, %v1072
      %v1113 = vsel %vm695, %v971, %v1073
      %v1114 = vsel %vm686, %v1072, %v1078
      %v1115 = vsel %vm686, %v1073, %v1079
      %v1116 = vsel %vm701, %v1114, %v1084
      %v1117 = vsel %vm701, %v1115, %v1085
      %v1118 = vsel %vm692, %v1084, %v1090
      %v1119 = vsel %vm692, %v1085, %v1091
      %v1120 = vsel %vm683, %v1090, %v1096
      %v1121 = vsel %vm683, %v1091, %v1097
      %v1122 = vsel %vm698, %v1120, %v1102
      %v1123 = vsel %vm698, %v1121, %v1103
      %v1124 = vsel %vm689, %v1102, %v1108
      %v1125 = vsel %vm689, %v1103, %v1109
      %v1126 = vld [vmem:[%s8] sm:$0xff]
      %v1127 = vld [vmem:[%s9] sm:$0xff]
      %1129 = vset.pattern.permute.xlu0 0
      %1130 = vperm.xlu0 %1129, %v1127
      %v1131 = vpop.permute.xlu0 %1130
      %vm1133 = vcmask 367616
      %v1135 = vsel %vm1133, %v1126, 0
      %v1138 = vsel %vm695, %v1068, 0
      %v1141 = vsel %vm695, %v1069, 0
      %1143 = vmatpush.msra.mxu0 0.0
      %1144 = vmatpush.msra.mxu0 0.0
      %1145 = vmatpush.msra.mxu0 0.0
      %1146 = vmatpush.msra.mxu0 0.0
      %1147 = vmatpush.msra.mxu0 0.0
      %1148 = vmatpush.msra.mxu0 0.0
      %1149 = vmatpush.msra.mxu0 0.0
      %1150 = vmatpush.msra.mxu0 0.0
      %1151 = vmatpush.msra.mxu0 0.0
      %1152 = vmatpush.msra.mxu0 0.0
      %1153 = vmatpush.msra.mxu0 %v1138
      %1154 = vmatpush.msra.mxu0 %v1124
      %1155 = vmatpush.msra.mxu0 %v1122
      %1156 = vmatpush.msra.mxu0 %v1118
      %1157 = vmatpush.msra.mxu0 %v1116
      %1158 = vmatpush.msra.mxu0 %v1112
      %1159 = vmatmul.f32.gmra.mxu0 %v1135
      %v1160 = vpop.f32.mrf.mxu0
      %v1161 = vadd.f32 %v1131, %v1160
      %1162 = vdwg.mxu0
      %1163 = vmatpush.msra.mxu0 0.0
      %1164 = vmatpush.msra.mxu0 0.0
      %1165 = vmatpush.msra.mxu0 0.0
      %1166 = vmatpush.msra.mxu0 0.0
      %1167 = vmatpush.msra.mxu0 0.0
      %1168 = vmatpush.msra.mxu0 0.0
      %1169 = vmatpush.msra.mxu0 0.0
      %1170 = vmatpush.msra.mxu0 0.0
      %1171 = vmatpush.msra.mxu0 0.0
      %1172 = vmatpush.msra.mxu0 0.0
      %1173 = vmatpush.msra.mxu0 %v1141
      %1174 = vmatpush.msra.mxu0 %v1125
      %1175 = vmatpush.msra.mxu0 %v1123
      %1176 = vmatpush.msra.mxu0 %v1119
      %1177 = vmatpush.msra.mxu0 %v1117
      %1178 = vmatpush.msra.mxu0 %v1113
      %1179 = vmatmul.f32.gmra.mxu0 %v1135
      %v1180 = vpop.f32.mrf.mxu0
      %v1181 = vadd.f32 %v1131, %v1180
      %1182 = vdwg.mxu0
      %v1183 = vmax.f32 %v1161, 0.0
      %v1184 = vmax.f32 %v1181, 0.0
      %1185 = vrot.lane.b32.xlu0 %v1183, 17
      %v1186 = vpop.permute.xlu0 %1185
      %1187 = vrot.lane.b32.xlu0 %v1184, 17
      %v1188 = vpop.permute.xlu0 %1187
      %v1189 = vsel %vm524, %v1186, %v1188
      %v1190 = vsel %vm524, %v1188, %v1186
      %v1191 = vmul.f32 %v1190, %v966
      %v1192 = vmul.f32 %v1189, %v967
      %1193 = vrot.lane.b32.xlu0 %v1183, 16
      %v1194 = vpop.permute.xlu0 %1193
      %1195 = vrot.lane.b32.xlu0 %v1184, 16
      %v1196 = vpop.permute.xlu0 %1195
      %v1197 = vsel %vm539, %v1194, %v1196
      %v1198 = vsel %vm539, %v1196, %v1194
      %v1199 = vmul.f32 %v1198, %v980
      %v1200 = vmul.f32 %v1197, %v981
      %1201 = vrot.lane.b32.xlu0 %v1183, 15
      %v1202 = vpop.permute.xlu0 %1201
      %1203 = vrot.lane.b32.xlu0 %v1184, 15
      %v1204 = vpop.permute.xlu0 %1203
      %v1205 = vsel %vm555, %v1202, %v1204
      %v1206 = vsel %vm555, %v1204, %v1202
      %v1207 = vmul.f32 %v1206, %v994
      %v1208 = vmul.f32 %v1205, %v995
      %1209 = vrot.lane.b32.xlu0 %v1183, 1
      %v1210 = vpop.permute.xlu0 %1209
      %1211 = vrot.lane.b32.xlu0 %v1184, 1
      %v1212 = vpop.permute.xlu0 %1211
      %v1213 = vsel %vm571, %v1210, %v1212
      %v1214 = vsel %vm571, %v1212, %v1210
      %v1215 = vmul.f32 %v1214, %v1008
      %v1216 = vmul.f32 %v1213, %v1009
      %1217 = vrot.lane.b32.xlu0 %v1183, 127
      %v1218 = vpop.permute.xlu0 %1217
      %1219 = vrot.lane.b32.xlu0 %v1184, 127
      %v1220 = vpop.permute.xlu0 %1219
      %v1221 = vsel %vm587, %v1218, %v1220
      %v1222 = vsel %vm587, %v1220, %v1218
      %v1223 = vmul.f32 %v1221, %v1022
      %v1224 = vmul.f32 %v1222, %v1023
      %1225 = vrot.lane.b32.xlu0 %v1183, 113
      %v1226 = vpop.permute.xlu0 %1225
      %1227 = vrot.lane.b32.xlu0 %v1184, 113
      %v1228 = vpop.permute.xlu0 %1227
      %v1229 = vsel %vm603, %v1226, %v1228
      %v1230 = vsel %vm603, %v1228, %v1226
      %v1231 = vmul.f32 %v1229, %v1036
      %v1232 = vmul.f32 %v1230, %v1037
      %1233 = vrot.lane.b32.xlu0 %v1183, 112
      %v1234 = vpop.permute.xlu0 %1233
      %1235 = vrot.lane.b32.xlu0 %v1184, 112
      %v1236 = vpop.permute.xlu0 %1235
      %v1237 = vsel %vm619, %v1234, %v1236
      %v1238 = vsel %vm619, %v1236, %v1234
      %v1239 = vmul.f32 %v1237, %v1050
      %v1240 = vmul.f32 %v1238, %v1051
      %1241 = vrot.lane.b32.xlu0 %v1183, 111
      %v1242 = vpop.permute.xlu0 %1241
      %1243 = vrot.lane.b32.xlu0 %v1184, 111
      %v1244 = vpop.permute.xlu0 %1243
      %v1245 = vsel %vm635, %v1242, %v1244
      %v1246 = vsel %vm635, %v1244, %v1242
      %v1247 = vmul.f32 %v1245, %v1064
      %v1248 = vmul.f32 %v1246, %v1065
      %v1249 = vld [vmem:[%s10] sm:$0xff]
      %v1250 = vld [vmem:[%s11] sm:$0xff]
      %1252 = vset.pattern.permute.xlu0 0
      %1253 = vperm.xlu0 %1252, %v1250
      %v1254 = vpop.permute.xlu0 %1253
      %v1257 = vsel %vm834, %v1249, 0
      %1259 = vmatpush.msra.mxu0 0.0
      %1260 = vmatpush.msra.mxu0 0.0
      %1261 = vmatpush.msra.mxu0 0.0
      %1262 = vmatpush.msra.mxu0 0.0
      %1263 = vmatpush.msra.mxu0 0.0
      %1264 = vmatpush.msra.mxu0 0.0
      %1265 = vmatpush.msra.mxu0 0.0
      %1266 = vmatpush.msra.mxu0 %v1247
      %1267 = vmatpush.msra.mxu0 %v1239
      %1268 = vmatpush.msra.mxu0 %v1231
      %1269 = vmatpush.msra.mxu0 %v1223
      %1270 = vmatpush.msra.mxu0 %v1183
      %1271 = vmatpush.msra.mxu0 %v1215
      %1272 = vmatpush.msra.mxu0 %v1207
      %1273 = vmatpush.msra.mxu0 %v1199
      %1274 = vmatpush.msra.mxu0 %v1191
      %1275 = vmatmul.f32.gmra.mxu0 %v1257
      %v1276 = vpop.f32.mrf.mxu0
      %v1277 = vadd.f32 %v1254, %v1276
      %1278 = vdwg.mxu0
      %1279 = vmatpush.msra.mxu0 0.0
      %1280 = vmatpush.msra.mxu0 0.0
      %1281 = vmatpush.msra.mxu0 0.0
      %1282 = vmatpush.msra.mxu0 0.0
      %1283 = vmatpush.msra.mxu0 0.0
      %1284 = vmatpush.msra.mxu0 0.0
      %1285 = vmatpush.msra.mxu0 0.0
      %1286 = vmatpush.msra.mxu0 %v1248
      %1287 = vmatpush.msra.mxu0 %v1240
      %1288 = vmatpush.msra.mxu0 %v1232
      %1289 = vmatpush.msra.mxu0 %v1224
      %1290 = vmatpush.msra.mxu0 %v1184
      %1291 = vmatpush.msra.mxu0 %v1216
      %1292 = vmatpush.msra.mxu0 %v1208
      %1293 = vmatpush.msra.mxu0 %v1200
      %1294 = vmatpush.msra.mxu0 %v1192
      %1295 = vmatmul.f32.gmra.mxu0 %v1257
      %v1296 = vpop.f32.mrf.mxu0
      %v1297 = vadd.f32 %v1254, %v1296
      %1298 = vdwg.mxu0
      %v1299 = vmax.f32 %v1277, 0.0
      %v1300 = vmax.f32 %v1297, 0.0
      %v1301 = vld [vmem:[%s12] sm:$0x1]
      %v1302 = vld [vmem:[#allocation2] sm:$0x1]
      %1304 = vset.pattern.permute.xlu0 0
      %1305 = vperm.xlu0 %1304, %v1302
      %v1306 = vpop.permute.xlu0 %1305
      %v1308 = vperm.slane %v1306, 0
      %v1310 = vsel %vm887, %v1301, 0
      %1312 = vmatpush.msra.mxu0 0.0
      %1313 = vmatpush.msra.mxu0 0.0
      %1314 = vmatpush.msra.mxu0 0.0
      %1315 = vmatpush.msra.mxu0 0.0
      %1316 = vmatpush.msra.mxu0 0.0
      %1317 = vmatpush.msra.mxu0 0.0
      %1318 = vmatpush.msra.mxu0 0.0
      %1319 = vmatpush.msra.mxu0 0.0
      %1320 = vmatpush.msra.mxu0 0.0
      %1321 = vmatpush.msra.mxu0 0.0
      %1322 = vmatpush.msra.mxu0 0.0
      %1323 = vmatpush.msra.mxu0 0.0
      %1324 = vmatpush.msra.mxu0 0.0
      %1325 = vmatpush.msra.mxu0 0.0
      %1326 = vmatpush.msra.mxu0 0.0
      %1327 = vmatpush.msra.mxu0 %v1299
      %1328 = vmatmul.f32.gmra.mxu0 %v1310
      %v1329 = vpop.f32.mrf.mxu0
      %v1330 = vadd.f32 %v1308, %v1329
      %1331 = vdwg.mxu0
      %1332 = vmatpush.msra.mxu0 0.0
      %1333 = vmatpush.msra.mxu0 0.0
      %1334 = vmatpush.msra.mxu0 0.0
      %1335 = vmatpush.msra.mxu0 0.0
      %1336 = vmatpush.msra.mxu0 0.0
      %1337 = vmatpush.msra.mxu0 0.0
      %1338 = vmatpush.msra.mxu0 0.0
      %1339 = vmatpush.msra.mxu0 0.0
      %1340 = vmatpush.msra.mxu0 0.0
      %1341 = vmatpush.msra.mxu0 0.0
      %1342 = vmatpush.msra.mxu0 0.0
      %1343 = vmatpush.msra.mxu0 0.0
      %1344 = vmatpush.msra.mxu0 0.0
      %1345 = vmatpush.msra.mxu0 0.0
      %1346 = vmatpush.msra.mxu0 0.0
      %1347 = vmatpush.msra.mxu0 %v1300
      %1348 = vmatmul.f32.gmra.mxu0 %v1310
      %v1349 = vpop.f32.mrf.mxu0
      %v1350 = vadd.f32 %v1308, %v1349
      %1351 = vdwg.mxu0
      %v1354 = vrot.slane %v1350, 7
      %v1355 = vsel %vm683, %v1330, %v1354
      %v1357 = vlaneseq
      %vm1358 = vcmp.ge.s32.totalorder %v1357, 0
      %vm1359 = vcmp.lt.s32.totalorder %v1357, 256
      %vm1360 = vmand %vm1358, %vm1359
      %1361 = vst.msk [vmem:[%s510] sm:$0x3] %vm1360, %v1355
      %s1362 = smul.u32 2, %s29
      %p1363 = scmp.lt.s32.totalorder %s1362, 3
      %s1364 = scalar_select %p1363, %s1362, 3
      %s1365 = smul.addr %s1364, 2
      %s1366 = scalar_lea.vmem %s14, %s1365
      %s1367 = smul.u32 2, %s29
      %p1368 = scmp.lt.s32.totalorder %s1367, 3
      %s1369 = scalar_select %p1368, %s1367, 3
      %s1370 = scalar_lea.vmem %s15, %s1369
      // Predicated region
      $region77: #{scorrnet_forward.1} parent=75 // pred_check
        %p1371 = pneg %p346
      $region78: #{scorrnet_forward.1} parent=75 // pred_check_branch
        %1373 = sbr.rel (%p1371) target = $region80
      $region79: #{scorrnet_forward.1} parent=75 // pred_region
        %s1374 = smul.u32 2, %s29
      $region80: #{scorrnet_forward.1} parent=75 // pred_fallthru
        _
      // Predicated region
      $region81: #{scorrnet_forward.1} parent=75 // pred_check
        %p1375 = pneg %p372
      $region82: #{scorrnet_forward.1} parent=75 // pred_check_branch
        %1377 = sbr.rel (%p1375) target = $region84
      $region83: #{scorrnet_forward.1} parent=75 // pred_region
        %s1378 = smul.u32 2, %s29
      $region84: #{scorrnet_forward.1} parent=75 // pred_fallthru
        _
    $region76: #{scorrnet_forward.1} parent=5 // pred_fallthru
      _
    %p1379 = scmp.le.s32.totalorder 2, %s24
    // Predicated region
    $region85: #{scorrnet_forward.1} parent=5 // pred_check
      %p1380 = pneg %p1379
    $region86: #{scorrnet_forward.1} parent=5 // pred_check_branch
      %1382 = sbr.rel (%p1380) target = $region88
    $region87: #{scorrnet_forward.1} parent=5 // pred_region
      %s1383 = ssub.s32 %s24, 2
      // Predicated region
      $region89: #{scorrnet_forward.1} parent=87 // pred_check
        %p1384 = pneg %p352
      $region90: #{scorrnet_forward.1} parent=87 // pred_check_branch
        %1386 = sbr.rel (%p1384) target = $region92
      $region91: #{scorrnet_forward.1} parent=87 // pred_region
        %s1387 = smul.u32 2, %s30
        %p1388 = scmp.lt.s32.totalorder %s1387, 3
        %s1389 = scalar_select %p1388, %s1387, 3
        %s1390 = smul.addr %s1389, 2
        %s1391 = scalar_lea.vmem %s14, %s1390
      $region92: #{scorrnet_forward.1} parent=87 // pred_fallthru
        _
      // Predicated region
      $region93: #{scorrnet_forward.1} parent=87 // pred_check
        %p1392 = pneg %p378
      $region94: #{scorrnet_forward.1} parent=87 // pred_check_branch
        %1394 = sbr.rel (%p1392) target = $region96
      $region95: #{scorrnet_forward.1} parent=87 // pred_region
        %s1395 = smul.u32 2, %s30
        %p1396 = scmp.lt.s32.totalorder %s1395, 3
        %s1397 = scalar_select %p1396, %s1395, 3
        %s1398 = scalar_lea.vmem %s15, %s1397
      $region96: #{scorrnet_forward.1} parent=87 // pred_fallthru
        _
    $region88: #{scorrnet_forward.1} parent=5 // pred_fallthru
      _
  $region6: #{scorrnet_forward.1} parent=0 // loop_footer
    %s28 = sadd.s32 1, %s24
  $region7: #{scorrnet_forward.1} parent=0 // loop_footer_branch
    %23 = sbr.rel target = $region3
  $region8: #{scorrnet_forward.1} parent=0 // loop_exit
    _

</llo_original>
